<compile_context>
chip_gen: v5e
topology: v5e:2x2
jax: 0.10.0
libtpu: 0.0.40
codegen_flags: <defaults>
</compile_context>

<pallas_src>
import jax
import jax.numpy as jnp
from jax.experimental import pallas as pl
from jax.experimental.pallas import tpu as pltpu


def _round_up(a, b):
    return -(-a // b) * b


def _vmem_capacity_bytes():
    try:
        cap = int(pltpu.get_tpu_info().vmem_capacity_bytes)
        if cap > 0:
            return cap
    except Exception:
        pass
    return 64 * 1024 * 1024  # conservative fallback (v7x per-TC VMEM)


def _num_tensorcores():
    try:
        kind = jax.devices()[0].device_kind.lower()
        if "v7" in kind or "7x" in kind:
            return 2
    except Exception:
        pass
    return 1


def _choose_block_n(N, CH, W, O, vmem_budget, num_tc, itemsize=4):
    """Samples per grid step.

    Keeps one (x block + out block) pair under `vmem_budget` (the pair is
    double-buffered by the pipeline, the caller already halved the limit),
    prefers a tn that divides N (no tail masking, no padding), and on a 2-TC
    chip prefers an even number of grid steps.
    """
    # lane-padded VMEM cost per sample: x rows pad W->128, out rows pad O->128.
    per_sample = CH * (_round_up(max(W, 1), 128) + _round_up(max(O, 1), 128)) * itemsize
    tn_cap = max(1, vmem_budget // per_sample)

    divisors = [d for d in range(1, N + 1) if N % d == 0 and d <= tn_cap]
    if not divisors:
        # No divisor fits: fall back to the largest fitting tn; Pallas masks
        # the out-of-bounds stores of the final partial block (no [:N] slice).
        return max(1, min(tn_cap, N))
    if num_tc >= 2 and N >= 2:
        even_grid = [d for d in divisors if (N // d) % 2 == 0]
        if even_grid:
            return max(even_grid)
    return max(divisors)


def _make_embedding_kernel(C, H):
    """Kernel closure: C, H are needed to un-flatten rows for the channel norm."""

    def kernel(x_ref, scale_ref, shift_ref, wT_ref, b_ref, o_ref):
        # x_ref:       (TN, C*H, W)   flattened (channel, height) rows
        # scale/shift: (C*H, 1)       BN folded per-(c,h)-row scale / shift
        # wT_ref:      (W, O)         linear weight, transposed (no O padding)
        # b_ref:       (1, O)
        # o_ref:       (TN, C*H, O)   exact-width output (masked vst, no pad waste)
        x = x_ref[...].astype(jnp.float32)                       # (TN, CH, W)
        TN, CH, W = x.shape
        O = wT_ref.shape[1]

        # BatchNorm2d (eval, folded) + ReLU -- elementwise on the VPU.
        xr = jnp.maximum(x * scale_ref[...][None] + shift_ref[...][None], 0.0)

        # One big MXU matmul over all TN samples in the block.  Operands are
        # cast to wT's dtype (f32 by default; bf16 if matmul_dtype=bf16), the
        # accumulation is always f32.
        y = jnp.dot(xr.reshape(TN * CH, W).astype(wT_ref.dtype), wT_ref[...],
                    preferred_element_type=jnp.float32)          # (TN*CH, O)
        y = y.reshape(TN, C, H, O) + b_ref[...]                  # bias broadcast

        # L2 normalization over the channel dim (dim=1 in NCHW).  rsqrt lives
        # on the EUP (its own VLIW slot).  No eps: matches PyTorch x.div(norm)
        # exactly (an all-zero channel column yields NaN, same as torch).
        inv = jax.lax.rsqrt(jnp.sum(y * y, axis=1, keepdims=True))
        o_ref[...] = (y * inv).reshape(TN, CH, O).astype(o_ref.dtype)

    return kernel


def embedding_forward(x, gamma, beta, running_mean, running_var, weight, bias,
                      eps=1e-3, block_n=None, matmul_dtype=None):
    """x: (N, C, H, W) with C == W == in_dim. weight: (out_dim, in_dim)."""
    N, C, H, W = x.shape
    O = weight.shape[0]
    CH = C * H

    # ---- plain-JAX glue: fold eval-mode BN into per-(c,h)-row scale/shift ----
    inv_std = jax.lax.rsqrt(running_var.astype(jnp.float32) + eps)
    scale_c = gamma.astype(jnp.float32) * inv_std                        # (C,)
    shift_c = beta.astype(jnp.float32) - running_mean.astype(jnp.float32) * scale_c
    scale = jnp.repeat(scale_c, H).reshape(CH, 1)                        # (CH,1)
    shift = jnp.repeat(shift_c, H).reshape(CH, 1)

    # ---- weights: no O padding (output stores write exactly O columns) -------
    mm_dtype = jnp.float32 if matmul_dtype is None else matmul_dtype
    wT = weight.T.astype(mm_dtype)                                       # (W, O)
    b = bias.astype(jnp.float32).reshape(1, O)

    # ---- VMEM-aware batch tiling ---------------------------------------------
    vmem_cap = _vmem_capacity_bytes()
    vmem_limit = (vmem_cap * 3) // 4                 # raised scoped-VMEM limit
    # x+out block pair is double-buffered -> give a single pair half the limit,
    # minus a small margin for the resident wT / bias / scale / shift.
    pair_budget = max(1 << 20, vmem_limit // 2 - (1 << 20))
    num_tc = _num_tensorcores()
    tn = (_choose_block_n(N, CH, W, O, pair_budget, num_tc)
          if block_n is None else block_n)
    grid = (pl.cdiv(N, tn),)                         # exact when tn | N

    x3 = x.reshape(N, CH, W)                         # contiguous -> free reshape

    kernel = _make_embedding_kernel(C, H)
    itemsize = jnp.dtype(jnp.float32).itemsize
    cost = pl.CostEstimate(                          # true sizes, not padded
        flops=2 * N * CH * W * O,
        transcendentals=N * H * O,                   # rsqrt per (n, h, o)
        bytes_accessed=(x3.size + wT.size + b.size + scale.size + shift.size
                        + N * CH * O) * itemsize,
    )

    out = pl.pallas_call(
        kernel,
        out_shape=jax.ShapeDtypeStruct((N, CH, O), x.dtype),
        grid_spec=pltpu.PrefetchScalarGridSpec(
            num_scalar_prefetch=0,
            grid=grid,
            in_specs=[
                pl.BlockSpec((tn, CH, W), lambda n: (n, 0, 0)),   # x block
                pl.BlockSpec((CH, 1), lambda n: (0, 0)),          # BN scale
                pl.BlockSpec((CH, 1), lambda n: (0, 0)),          # BN shift
                pl.BlockSpec((W, O), lambda n: (0, 0)),           # W^T
                pl.BlockSpec((1, O), lambda n: (0, 0)),           # bias
            ],
            out_specs=pl.BlockSpec((tn, CH, O), lambda n: (n, 0, 0)),
        ),
        compiler_params=pltpu.CompilerParams(
            dimension_semantics=("parallel",),
            vmem_limit_bytes=int(vmem_limit)),
        cost_estimate=cost,
    )(x3, scale, shift, wT, b)

    # Contiguous split of the middle dim -> free; no slicing pass over HBM.
    return out.reshape(N, C, H, O)


def embedding_ref(x, gamma, beta, mean, var, weight, bias, eps=1e-3):
    """Pure-JAX reference mirroring the PyTorch forward (eval-mode BN)."""
    xb = (x - mean[None, :, None, None]) / jnp.sqrt(var[None, :, None, None] + eps)
    xb = xb * gamma[None, :, None, None] + beta[None, :, None, None]
    xr = jnp.maximum(xb, 0.0)
    y = jnp.einsum('nchw,ow->ncho', xr, weight) + bias
    norm = jnp.sqrt(jnp.sum(y * y, axis=1, keepdims=True))
    return y / norm


if __name__ == "__main__":
    key = jax.random.PRNGKey(0)
    in_dim, out_dim, N, H = 16, 24, 8, 4
    k1, k2, k3, k4, k5, k6, k7 = jax.random.split(key, 7)

    # The PyTorch module requires channel dim C == in_dim (BatchNorm2d) AND
    # last dim W == in_dim (Linear), so x is (N, in_dim, H, in_dim).
    x = jax.random.normal(k1, (N, in_dim, H, in_dim), dtype=jnp.float32)
    gamma = 1.0 + 0.1 * jax.random.normal(k2, (in_dim,), dtype=jnp.float32)
    beta = 0.1 * jax.random.normal(k3, (in_dim,), dtype=jnp.float32)
    running_mean = 0.1 * jax.random.normal(k4, (in_dim,), dtype=jnp.float32)
    running_var = jax.random.uniform(k5, (in_dim,), minval=0.5, maxval=1.5,
                                     dtype=jnp.float32)
    weight = jax.random.normal(k6, (out_dim, in_dim), dtype=jnp.float32) / jnp.sqrt(in_dim)
    bias = 0.1 * jax.random.normal(k7, (out_dim,), dtype=jnp.float32)

    out = embedding_forward(x, gamma, beta, running_mean, running_var, weight, bias)
    out = jax.block_until_ready(out)

    ref = embedding_ref(x, gamma, beta, running_mean, running_var, weight, bias)
    assert out.shape == (N, in_dim, H, out_dim), out.shape
    assert jnp.allclose(out, ref, atol=1e-4, rtol=1e-4), "Pallas output mismatch vs reference"
    print("KERNEL_OK")
</pallas_src>

<mosaic_0001>
module attributes {stable_mosaic.version = 11 : i64} {
  func.func @kernel(%arg0: i32, %arg1: memref<8x64x16xf32, #tpu.memory_space<vmem>>, %arg2: memref<64x1xf32, #tpu.memory_space<vmem>>, %arg3: memref<64x1xf32, #tpu.memory_space<vmem>>, %arg4: memref<16x24xf32, #tpu.memory_space<vmem>>, %arg5: memref<1x24xf32, #tpu.memory_space<vmem>>, %arg6: memref<8x64x24xf32, #tpu.memory_space<vmem>>) attributes {dimension_semantics = [#tpu.dimension_semantics<parallel>], iteration_bounds = array<i64: 1>, scalar_prefetch = 0 : i64, scratch_operands = 0 : i64, tpu.core_type = #tpu.core_type<tc>, window_params = [{transform_indices = @transform_0, window_bounds = array<i64: 8, 64, 16>}, {pipeline_mode = #tpu.pipeline_mode<synchronous>, transform_indices = @transform_1, window_bounds = array<i64: 64, 1>}, {pipeline_mode = #tpu.pipeline_mode<synchronous>, transform_indices = @transform_2, window_bounds = array<i64: 64, 1>}, {pipeline_mode = #tpu.pipeline_mode<synchronous>, transform_indices = @transform_3, window_bounds = array<i64: 16, 24>}, {pipeline_mode = #tpu.pipeline_mode<synchronous>, transform_indices = @transform_4, window_bounds = array<i64: 1, 24>}, {transform_indices = @transform_5, window_bounds = array<i64: 8, 64, 24>}]} {
    %c0 = arith.constant 0 : index
    %c0_0 = arith.constant 0 : index
    %c0_1 = arith.constant 0 : index
    %0 = vector.load %arg1[%c0, %c0_0, %c0_1] : memref<8x64x16xf32, #tpu.memory_space<vmem>>, vector<8x64x16xf32>
    %c0_2 = arith.constant 0 : index
    %c0_3 = arith.constant 0 : index
    %1 = vector.load %arg2[%c0_2, %c0_3] : memref<64x1xf32, #tpu.memory_space<vmem>>, vector<64x1xf32>
    %2 = vector.shape_cast %1 : vector<64x1xf32> to vector<1x64x1xf32>
    %3 = vector.broadcast %2 : vector<1x64x1xf32> to vector<8x64x16xf32>
    %4 = arith.mulf %0, %3 : vector<8x64x16xf32>
    %c0_4 = arith.constant 0 : index
    %c0_5 = arith.constant 0 : index
    %5 = vector.load %arg3[%c0_4, %c0_5] : memref<64x1xf32, #tpu.memory_space<vmem>>, vector<64x1xf32>
    %6 = vector.shape_cast %5 : vector<64x1xf32> to vector<1x64x1xf32>
    %7 = vector.broadcast %6 : vector<1x64x1xf32> to vector<8x64x16xf32>
    %8 = arith.addf %4, %7 : vector<8x64x16xf32>
    %cst = arith.constant 0.000000e+00 : f32
    %9 = vector.broadcast %cst : f32 to vector<8x64x16xf32>
    %10 = arith.maximumf %8, %9 : vector<8x64x16xf32>
    %11 = vector.shape_cast %10 : vector<8x64x16xf32> to vector<512x16xf32>
    %c0_6 = arith.constant 0 : index
    %c0_7 = arith.constant 0 : index
    %12 = vector.load %arg4[%c0_6, %c0_7] : memref<16x24xf32, #tpu.memory_space<vmem>>, vector<16x24xf32>
    %cst_8 = arith.constant dense<0.000000e+00> : vector<512x24xf32>
    %13 = tpu.matmul %11, %12, %cst_8 {dimension_numbers = #tpu.dot_dimension_numbers<[1], [0], [0], [1], [0, 0, 1, 1], [], []>} : vector<512x16xf32>, vector<16x24xf32>, vector<512x24xf32> -> vector<512x24xf32>
    %14 = vector.shape_cast %13 : vector<512x24xf32> to vector<8x16x4x24xf32>
    %c0_9 = arith.constant 0 : index
    %c0_10 = arith.constant 0 : index
    %15 = vector.load %arg5[%c0_9, %c0_10] : memref<1x24xf32, #tpu.memory_space<vmem>>, vector<1x24xf32>
    %16 = vector.shape_cast %15 : vector<1x24xf32> to vector<1x1x1x24xf32>
    %17 = vector.broadcast %16 : vector<1x1x1x24xf32> to vector<8x16x4x24xf32>
    %18 = arith.addf %14, %17 : vector<8x16x4x24xf32>
    %19 = arith.mulf %18, %18 : vector<8x16x4x24xf32>
    %cst_11 = arith.constant dense<0.000000e+00> : vector<8x4x24xf32>
    %20 = vector.multi_reduction <add>, %19, %cst_11 [1] : vector<8x16x4x24xf32> to vector<8x4x24xf32>
    %21 = vector.shape_cast %20 : vector<8x4x24xf32> to vector<8x1x4x24xf32>
    %22 = math.rsqrt %21 : vector<8x1x4x24xf32>
    %23 = vector.broadcast %22 : vector<8x1x4x24xf32> to vector<8x16x4x24xf32>
    %24 = arith.mulf %18, %23 : vector<8x16x4x24xf32>
    %25 = vector.shape_cast %24 : vector<8x16x4x24xf32> to vector<8x64x24xf32>
    %c0_12 = arith.constant 0 : index
    %c0_13 = arith.constant 0 : index
    %c0_14 = arith.constant 0 : index
    %26 = vector.load %arg6[%c0_12, %c0_13, %c0_14] : memref<8x64x24xf32, #tpu.memory_space<vmem>>, vector<8x64x24xf32>
    tpu.vector_store %arg6[%c0_12, %c0_13, %c0_14], %25 {strides = array<i32>} : memref<8x64x24xf32, #tpu.memory_space<vmem>>, vector<8x64x24xf32>,
    return
  }
  func.func @transform_0(%arg0: i32) -> (i32, i32, i32) {
    %c0_i32 = arith.constant 0 : i32
    %c0_i32_0 = arith.constant 0 : i32
    %c0_i32_1 = arith.constant 0 : i32
    return %arg0, %c0_i32, %c0_i32_0 : i32, i32, i32
  }
  func.func @transform_1(%arg0: i32) -> (i32, i32) {
    %c0_i32 = arith.constant 0 : i32
    %c0_i32_0 = arith.constant 0 : i32
    %c0_i32_1 = arith.constant 0 : i32
    return %c0_i32, %c0_i32_0 : i32, i32
  }
  func.func @transform_2(%arg0: i32) -> (i32, i32) {
    %c0_i32 = arith.constant 0 : i32
    %c0_i32_0 = arith.constant 0 : i32
    %c0_i32_1 = arith.constant 0 : i32
    return %c0_i32, %c0_i32_0 : i32, i32
  }
  func.func @transform_3(%arg0: i32) -> (i32, i32) {
    %c0_i32 = arith.constant 0 : i32
    %c0_i32_0 = arith.constant 0 : i32
    %c0_i32_1 = arith.constant 0 : i32
    return %c0_i32, %c0_i32_0 : i32, i32
  }
  func.func @transform_4(%arg0: i32) -> (i32, i32) {
    %c0_i32 = arith.constant 0 : i32
    %c0_i32_0 = arith.constant 0 : i32
    %c0_i32_1 = arith.constant 0 : i32
    return %c0_i32, %c0_i32_0 : i32, i32
  }
  func.func @transform_5(%arg0: i32) -> (i32, i32, i32) {
    %c0_i32 = arith.constant 0 : i32
    %c0_i32_0 = arith.constant 0 : i32
    %c0_i32_1 = arith.constant 0 : i32
    return %arg0, %c0_i32, %c0_i32_0 : i32, i32, i32
  }
}

</mosaic_0001>

<llo_original>
// kernel: tpu_custom_call.1
$region0: #{tpu_custom_call.1}
  #allocation0 [shape = 'u32[]', space=smem, size = 0x4, offset = 0x4, fixed_abs, tag = 'smem constant byte address 0x4 - core index']
  #allocation1 [shape = 'u32[72,128]{1,0:T(1,128)}', space=vmem, size = 0x9000, scoped, tag = 'internal scratch']
  %s0 = inlined_call_operand.vmem [shape: f32[8,64,16], index: 0, kind: input, shape index: {}]
  %s1 = inlined_call_operand.vmem [shape: f32[64,1], index: 1, kind: input, shape index: {}]
  %s2 = inlined_call_operand.vmem [shape: f32[64,1], index: 2, kind: input, shape index: {}]
  %s3 = inlined_call_operand.vmem [shape: f32[16,24], index: 3, kind: input, shape index: {}]
  %s4 = inlined_call_operand.vmem [shape: f32[1,24], index: 4, kind: input, shape index: {}]
  %s5 = inlined_call_operand.vmem [shape: f32[8,64,24], index: 5, kind: output, shape index: {}]
  %s6 = sld [smem:[#allocation0]]
  $region30: #{tpu_custom_call.1} parent=0
    _
  %s8 = ssub.s32 1, %s6
  %s9 = scalar_select 0, %s8, %s6
  // Predicated region
  $region2: #{tpu_custom_call.1} parent=0 // pred_check
    _
  $region3: #{tpu_custom_call.1} parent=0 // pred_check_branch
    %11 = sbr.rel (0) target = $region5
  $region4: #{tpu_custom_call.1} parent=0 // pred_region
    _
  $region5: #{tpu_custom_call.1} parent=0 // pred_fallthru
    _
  // Predicated region
  $region6: #{tpu_custom_call.1} parent=0 // pred_check
    _
  $region7: #{tpu_custom_call.1} parent=0 // pred_check_branch
    %13 = sbr.rel (0) target = $region9
  $region8: #{tpu_custom_call.1} parent=0 // pred_region
    _
  $region9: #{tpu_custom_call.1} parent=0 // pred_fallthru
    _
  // Predicated region
  $region10: #{tpu_custom_call.1} parent=0 // pred_check
    _
  $region11: #{tpu_custom_call.1} parent=0 // pred_check_branch
    %15 = sbr.rel (0) target = $region13
  $region12: #{tpu_custom_call.1} parent=0 // pred_region
    _
  $region13: #{tpu_custom_call.1} parent=0 // pred_fallthru
    _
  // Predicated region
  $region14: #{tpu_custom_call.1} parent=0 // pred_check
    _
  $region15: #{tpu_custom_call.1} parent=0 // pred_check_branch
    %17 = sbr.rel (0) target = $region17
  $region16: #{tpu_custom_call.1} parent=0 // pred_region
    _
  $region17: #{tpu_custom_call.1} parent=0 // pred_fallthru
    _
  // Predicated region
  $region18: #{tpu_custom_call.1} parent=0 // pred_check
    _
  $region19: #{tpu_custom_call.1} parent=0 // pred_check_branch
    %19 = sbr.rel (0) target = $region21
  $region20: #{tpu_custom_call.1} parent=0 // pred_region
    _
  $region21: #{tpu_custom_call.1} parent=0 // pred_fallthru
    _
  %v20 = vld [vmem:[%s0] sm:$0xff]
  %v21 = vld [vmem:[%s0 + $0x8] sm:$0xff]
  %v22 = vld [vmem:[%s0 + $0x10] sm:$0xff]
  %v23 = vld [vmem:[%s0 + $0x18] sm:$0xff]
  %v24 = vld [vmem:[%s0 + $0x20] sm:$0xff]
  %v25 = vld [vmem:[%s0 + $0x28] sm:$0xff]
  %v26 = vld [vmem:[%s0 + $0x30] sm:$0xff]
  %v27 = vld [vmem:[%s0 + $0x38] sm:$0xff]
  %v28 = vld [vmem:[%s0 + $0x40] sm:$0xff]
  %v29 = vld [vmem:[%s0 + $0x48] sm:$0xff]
  %v30 = vld [vmem:[%s0 + $0x50] sm:$0xff]
  %v31 = vld [vmem:[%s0 + $0x58] sm:$0xff]
  %v32 = vld [vmem:[%s0 + $0x60] sm:$0xff]
  %v33 = vld [vmem:[%s0 + $0x68] sm:$0xff]
  %v34 = vld [vmem:[%s0 + $0x70] sm:$0xff]
  %v35 = vld [vmem:[%s0 + $0x78] sm:$0xff]
  %v36 = vld [vmem:[%s0 + $0x80] sm:$0xff]
  %v37 = vld [vmem:[%s0 + $0x88] sm:$0xff]
  %v38 = vld [vmem:[%s0 + $0x90] sm:$0xff]
  %v39 = vld [vmem:[%s0 + $0x98] sm:$0xff]
  %v40 = vld [vmem:[%s0 + $0xa0] sm:$0xff]
  %v41 = vld [vmem:[%s0 + $0xa8] sm:$0xff]
  %v42 = vld [vmem:[%s0 + $0xb0] sm:$0xff]
  %v43 = vld [vmem:[%s0 + $0xb8] sm:$0xff]
  %v44 = vld [vmem:[%s0 + $0xc0] sm:$0xff]
  %v45 = vld [vmem:[%s0 + $0xc8] sm:$0xff]
  %v46 = vld [vmem:[%s0 + $0xd0] sm:$0xff]
  %v47 = vld [vmem:[%s0 + $0xd8] sm:$0xff]
  %v48 = vld [vmem:[%s0 + $0xe0] sm:$0xff]
  %v49 = vld [vmem:[%s0 + $0xe8] sm:$0xff]
  %v50 = vld [vmem:[%s0 + $0xf0] sm:$0xff]
  %v51 = vld [vmem:[%s0 + $0xf8] sm:$0xff]
  %v52 = vld [vmem:[%s0 + $0x100] sm:$0xff]
  %v53 = vld [vmem:[%s0 + $0x108] sm:$0xff]
  %v54 = vld [vmem:[%s0 + $0x110] sm:$0xff]
  %v55 = vld [vmem:[%s0 + $0x118] sm:$0xff]
  %v56 = vld [vmem:[%s0 + $0x120] sm:$0xff]
  %v57 = vld [vmem:[%s0 + $0x128] sm:$0xff]
  %v58 = vld [vmem:[%s0 + $0x130] sm:$0xff]
  %v59 = vld [vmem:[%s0 + $0x138] sm:$0xff]
  %v60 = vld [vmem:[%s0 + $0x140] sm:$0xff]
  %v61 = vld [vmem:[%s0 + $0x148] sm:$0xff]
  %v62 = vld [vmem:[%s0 + $0x150] sm:$0xff]
  %v63 = vld [vmem:[%s0 + $0x158] sm:$0xff]
  %v64 = vld [vmem:[%s0 + $0x160] sm:$0xff]
  %v65 = vld [vmem:[%s0 + $0x168] sm:$0xff]
  %v66 = vld [vmem:[%s0 + $0x170] sm:$0xff]
  %v67 = vld [vmem:[%s0 + $0x178] sm:$0xff]
  %v68 = vld [vmem:[%s0 + $0x180] sm:$0xff]
  %v69 = vld [vmem:[%s0 + $0x188] sm:$0xff]
  %v70 = vld [vmem:[%s0 + $0x190] sm:$0xff]
  %v71 = vld [vmem:[%s0 + $0x198] sm:$0xff]
  %v72 = vld [vmem:[%s0 + $0x1a0] sm:$0xff]
  %v73 = vld [vmem:[%s0 + $0x1a8] sm:$0xff]
  %v74 = vld [vmem:[%s0 + $0x1b0] sm:$0xff]
  %v75 = vld [vmem:[%s0 + $0x1b8] sm:$0xff]
  %v76 = vld [vmem:[%s0 + $0x1c0] sm:$0xff]
  %v77 = vld [vmem:[%s0 + $0x1c8] sm:$0xff]
  %v78 = vld [vmem:[%s0 + $0x1d0] sm:$0xff]
  %v79 = vld [vmem:[%s0 + $0x1d8] sm:$0xff]
  %v80 = vld [vmem:[%s0 + $0x1e0] sm:$0xff]
  %v81 = vld [vmem:[%s0 + $0x1e8] sm:$0xff]
  %v82 = vld [vmem:[%s0 + $0x1f0] sm:$0xff]
  %v83 = vld [vmem:[%s0 + $0x1f8] sm:$0xff]
  %v84 = vld [vmem:[%s1] sm:$0xff]
  %v85 = vld [vmem:[%s1 + $0x8] sm:$0xff]
  %v86 = vld [vmem:[%s1 + $0x10] sm:$0xff]
  %v87 = vld [vmem:[%s1 + $0x18] sm:$0xff]
  %v88 = vld [vmem:[%s1 + $0x20] sm:$0xff]
  %v89 = vld [vmem:[%s1 + $0x28] sm:$0xff]
  %v90 = vld [vmem:[%s1 + $0x30] sm:$0xff]
  %v91 = vld [vmem:[%s1 + $0x38] sm:$0xff]
  %93 = vset.pattern.permute.xlu0 0
  %94 = vperm.xlu0 %93, %v84
  %v95 = vpop.permute.xlu0 %94
  %98 = vset.pattern.permute.xlu0 0
  %99 = vperm.xlu0 %98, %v85
  %v100 = vpop.permute.xlu0 %99
  %103 = vset.pattern.permute.xlu0 0
  %104 = vperm.xlu0 %103, %v86
  %v105 = vpop.permute.xlu0 %104
  %108 = vset.pattern.permute.xlu0 0
  %109 = vperm.xlu0 %108, %v87
  %v110 = vpop.permute.xlu0 %109
  %113 = vset.pattern.permute.xlu0 0
  %114 = vperm.xlu0 %113, %v88
  %v115 = vpop.permute.xlu0 %114
  %118 = vset.pattern.permute.xlu0 0
  %119 = vperm.xlu0 %118, %v89
  %v120 = vpop.permute.xlu0 %119
  %123 = vset.pattern.permute.xlu0 0
  %124 = vperm.xlu0 %123, %v90
  %v125 = vpop.permute.xlu0 %124
  %128 = vset.pattern.permute.xlu0 0
  %129 = vperm.xlu0 %128, %v91
  %v130 = vpop.permute.xlu0 %129
  %v132 = vmul.f32 %v20, %v95
  %v133 = vmul.f32 %v21, %v100
  %v134 = vmul.f32 %v22, %v105
  %v135 = vmul.f32 %v23, %v110
  %v136 = vmul.f32 %v24, %v115
  %v137 = vmul.f32 %v25, %v120
  %v138 = vmul.f32 %v26, %v125
  %v139 = vmul.f32 %v27, %v130
  %v140 = vmul.f32 %v28, %v95
  %v141 = vmul.f32 %v29, %v100
  %v142 = vmul.f32 %v30, %v105
  %v143 = vmul.f32 %v31, %v110
  %v144 = vmul.f32 %v32, %v115
  %v145 = vmul.f32 %v33, %v120
  %v146 = vmul.f32 %v34, %v125
  %v147 = vmul.f32 %v35, %v130
  %v148 = vmul.f32 %v36, %v95
  %v149 = vmul.f32 %v37, %v100
  %v150 = vmul.f32 %v38, %v105
  %v151 = vmul.f32 %v39, %v110
  %v152 = vmul.f32 %v40, %v115
  %v153 = vmul.f32 %v41, %v120
  %v154 = vmul.f32 %v42, %v125
  %v155 = vmul.f32 %v43, %v130
  %v156 = vmul.f32 %v44, %v95
  %v157 = vmul.f32 %v45, %v100
  %v158 = vmul.f32 %v46, %v105
  %v159 = vmul.f32 %v47, %v110
  %v160 = vmul.f32 %v48, %v115
  %v161 = vmul.f32 %v49, %v120
  %v162 = vmul.f32 %v50, %v125
  %v163 = vmul.f32 %v51, %v130
  %v164 = vmul.f32 %v52, %v95
  %v165 = vmul.f32 %v53, %v100
  %v166 = vmul.f32 %v54, %v105
  %v167 = vmul.f32 %v55, %v110
  %v168 = vmul.f32 %v56, %v115
  %v169 = vmul.f32 %v57, %v120
  %v170 = vmul.f32 %v58, %v125
  %v171 = vmul.f32 %v59, %v130
  %v172 = vmul.f32 %v60, %v95
  %v173 = vmul.f32 %v61, %v100
  %v174 = vmul.f32 %v62, %v105
  %v175 = vmul.f32 %v63, %v110
  %v176 = vmul.f32 %v64, %v115
  %v177 = vmul.f32 %v65, %v120
  %v178 = vmul.f32 %v66, %v125
  %v179 = vmul.f32 %v67, %v130
  %v180 = vmul.f32 %v68, %v95
  %v181 = vmul.f32 %v69, %v100
  %v182 = vmul.f32 %v70, %v105
  %v183 = vmul.f32 %v71, %v110
  %v184 = vmul.f32 %v72, %v115
  %v185 = vmul.f32 %v73, %v120
  %v186 = vmul.f32 %v74, %v125
  %v187 = vmul.f32 %v75, %v130
  %v188 = vmul.f32 %v76, %v95
  %v189 = vmul.f32 %v77, %v100
  %v190 = vmul.f32 %v78, %v105
  %v191 = vmul.f32 %v79, %v110
  %v192 = vmul.f32 %v80, %v115
  %v193 = vmul.f32 %v81, %v120
  %v194 = vmul.f32 %v82, %v125
  %v195 = vmul.f32 %v83, %v130
  %v196 = vld [vmem:[%s2] sm:$0xff]
  %v197 = vld [vmem:[%s2 + $0x8] sm:$0xff]
  %v198 = vld [vmem:[%s2 + $0x10] sm:$0xff]
  %v199 = vld [vmem:[%s2 + $0x18] sm:$0xff]
  %v200 = vld [vmem:[%s2 + $0x20] sm:$0xff]
  %v201 = vld [vmem:[%s2 + $0x28] sm:$0xff]
  %v202 = vld [vmem:[%s2 + $0x30] sm:$0xff]
  %v203 = vld [vmem:[%s2 + $0x38] sm:$0xff]
  %205 = vset.pattern.permute.xlu0 0
  %206 = vperm.xlu0 %205, %v196
  %v207 = vpop.permute.xlu0 %206
  %210 = vset.pattern.permute.xlu0 0
  %211 = vperm.xlu0 %210, %v197
  %v212 = vpop.permute.xlu0 %211
  %215 = vset.pattern.permute.xlu0 0
  %216 = vperm.xlu0 %215, %v198
  %v217 = vpop.permute.xlu0 %216
  %220 = vset.pattern.permute.xlu0 0
  %221 = vperm.xlu0 %220, %v199
  %v222 = vpop.permute.xlu0 %221
  %225 = vset.pattern.permute.xlu0 0
  %226 = vperm.xlu0 %225, %v200
  %v227 = vpop.permute.xlu0 %226
  %230 = vset.pattern.permute.xlu0 0
  %231 = vperm.xlu0 %230, %v201
  %v232 = vpop.permute.xlu0 %231
  %235 = vset.pattern.permute.xlu0 0
  %236 = vperm.xlu0 %235, %v202
  %v237 = vpop.permute.xlu0 %236
  %240 = vset.pattern.permute.xlu0 0
  %241 = vperm.xlu0 %240, %v203
  %v242 = vpop.permute.xlu0 %241
  %v244 = vadd.f32 %v132, %v207
  %v245 = vadd.f32 %v133, %v212
  %v246 = vadd.f32 %v134, %v217
  %v247 = vadd.f32 %v135, %v222
  %v248 = vadd.f32 %v136, %v227
  %v249 = vadd.f32 %v137, %v232
  %v250 = vadd.f32 %v138, %v237
  %v251 = vadd.f32 %v139, %v242
  %v252 = vadd.f32 %v140, %v207
  %v253 = vadd.f32 %v141, %v212
  %v254 = vadd.f32 %v142, %v217
  %v255 = vadd.f32 %v143, %v222
  %v256 = vadd.f32 %v144, %v227
  %v257 = vadd.f32 %v145, %v232
  %v258 = vadd.f32 %v146, %v237
  %v259 = vadd.f32 %v147, %v242
  %v260 = vadd.f32 %v148, %v207
  %v261 = vadd.f32 %v149, %v212
  %v262 = vadd.f32 %v150, %v217
  %v263 = vadd.f32 %v151, %v222
  %v264 = vadd.f32 %v152, %v227
  %v265 = vadd.f32 %v153, %v232
  %v266 = vadd.f32 %v154, %v237
  %v267 = vadd.f32 %v155, %v242
  %v268 = vadd.f32 %v156, %v207
  %v269 = vadd.f32 %v157, %v212
  %v270 = vadd.f32 %v158, %v217
  %v271 = vadd.f32 %v159, %v222
  %v272 = vadd.f32 %v160, %v227
  %v273 = vadd.f32 %v161, %v232
  %v274 = vadd.f32 %v162, %v237
  %v275 = vadd.f32 %v163, %v242
  %v276 = vadd.f32 %v164, %v207
  %v277 = vadd.f32 %v165, %v212
  %v278 = vadd.f32 %v166, %v217
  %v279 = vadd.f32 %v167, %v222
  %v280 = vadd.f32 %v168, %v227
  %v281 = vadd.f32 %v169, %v232
  %v282 = vadd.f32 %v170, %v237
  %v283 = vadd.f32 %v171, %v242
  %v284 = vadd.f32 %v172, %v207
  %v285 = vadd.f32 %v173, %v212
  %v286 = vadd.f32 %v174, %v217
  %v287 = vadd.f32 %v175, %v222
  %v288 = vadd.f32 %v176, %v227
  %v289 = vadd.f32 %v177, %v232
  %v290 = vadd.f32 %v178, %v237
  %v291 = vadd.f32 %v179, %v242
  %v292 = vadd.f32 %v180, %v207
  %v293 = vadd.f32 %v181, %v212
  %v294 = vadd.f32 %v182, %v217
  %v295 = vadd.f32 %v183, %v222
  %v296 = vadd.f32 %v184, %v227
  %v297 = vadd.f32 %v185, %v232
  %v298 = vadd.f32 %v186, %v237
  %v299 = vadd.f32 %v187, %v242
  %v300 = vadd.f32 %v188, %v207
  %v301 = vadd.f32 %v189, %v212
  %v302 = vadd.f32 %v190, %v217
  %v303 = vadd.f32 %v191, %v222
  %v304 = vadd.f32 %v192, %v227
  %v305 = vadd.f32 %v193, %v232
  %v306 = vadd.f32 %v194, %v237
  %v307 = vadd.f32 %v195, %v242
  %v308 = vmax.f32 %v244, 0.0
  %v309 = vmax.f32 %v245, 0.0
  %v310 = vmax.f32 %v246, 0.0
  %v311 = vmax.f32 %v247, 0.0
  %v312 = vmax.f32 %v248, 0.0
  %v313 = vmax.f32 %v249, 0.0
  %v314 = vmax.f32 %v250, 0.0
  %v315 = vmax.f32 %v251, 0.0
  %v316 = vmax.f32 %v252, 0.0
  %v317 = vmax.f32 %v253, 0.0
  %v318 = vmax.f32 %v254, 0.0
  %v319 = vmax.f32 %v255, 0.0
  %v320 = vmax.f32 %v256, 0.0
  %v321 = vmax.f32 %v257, 0.0
  %v322 = vmax.f32 %v258, 0.0
  %v323 = vmax.f32 %v259, 0.0
  %v324 = vmax.f32 %v260, 0.0
  %v325 = vmax.f32 %v261, 0.0
  %v326 = vmax.f32 %v262, 0.0
  %v327 = vmax.f32 %v263, 0.0
  %v328 = vmax.f32 %v264, 0.0
  %v329 = vmax.f32 %v265, 0.0
  %v330 = vmax.f32 %v266, 0.0
  %v331 = vmax.f32 %v267, 0.0
  %v332 = vmax.f32 %v268, 0.0
  %v333 = vmax.f32 %v269, 0.0
  %v334 = vmax.f32 %v270, 0.0
  %v335 = vmax.f32 %v271, 0.0
  %v336 = vmax.f32 %v272, 0.0
  %v337 = vmax.f32 %v273, 0.0
  %v338 = vmax.f32 %v274, 0.0
  %v339 = vmax.f32 %v275, 0.0
  %v340 = vmax.f32 %v276, 0.0
  %v341 = vmax.f32 %v277, 0.0
  %v342 = vmax.f32 %v278, 0.0
  %v343 = vmax.f32 %v279, 0.0
  %v344 = vmax.f32 %v280, 0.0
  %v345 = vmax.f32 %v281, 0.0
  %v346 = vmax.f32 %v282, 0.0
  %v347 = vmax.f32 %v283, 0.0
  %v348 = vmax.f32 %v284, 0.0
  %v349 = vmax.f32 %v285, 0.0
  %v350 = vmax.f32 %v286, 0.0
  %v351 = vmax.f32 %v287, 0.0
  %v352 = vmax.f32 %v288, 0.0
  %v353 = vmax.f32 %v289, 0.0
  %v354 = vmax.f32 %v290, 0.0
  %v355 = vmax.f32 %v291, 0.0
  %v356 = vmax.f32 %v292, 0.0
  %v357 = vmax.f32 %v293, 0.0
  %v358 = vmax.f32 %v294, 0.0
  %v359 = vmax.f32 %v295, 0.0
  %v360 = vmax.f32 %v296, 0.0
  %v361 = vmax.f32 %v297, 0.0
  %v362 = vmax.f32 %v298, 0.0
  %v363 = vmax.f32 %v299, 0.0
  %v364 = vmax.f32 %v300, 0.0
  %v365 = vmax.f32 %v301, 0.0
  %v366 = vmax.f32 %v302, 0.0
  %v367 = vmax.f32 %v303, 0.0
  %v368 = vmax.f32 %v304, 0.0
  %v369 = vmax.f32 %v305, 0.0
  %v370 = vmax.f32 %v306, 0.0
  %v371 = vmax.f32 %v307, 0.0
  %v372 = vld [vmem:[%s3] sm:$0xff]
  %v373 = vld [vmem:[%s3 + $0x8] sm:$0xff]
  %vm374 = vcmask 130048
  %v376 = vsel %vm374, %v308, 0
  %v379 = vsel %vm374, %v309, 0
  %v382 = vsel %vm374, %v310, 0
  %v385 = vsel %vm374, %v311, 0
  %v388 = vsel %vm374, %v312, 0
  %v391 = vsel %vm374, %v313, 0
  %v394 = vsel %vm374, %v314, 0
  %v397 = vsel %vm374, %v315, 0
  %v400 = vsel %vm374, %v316, 0
  %v403 = vsel %vm374, %v317, 0
  %v406 = vsel %vm374, %v318, 0
  %v409 = vsel %vm374, %v319, 0
  %v412 = vsel %vm374, %v320, 0
  %v415 = vsel %vm374, %v321, 0
  %v418 = vsel %vm374, %v322, 0
  %v421 = vsel %vm374, %v323, 0
  %v424 = vsel %vm374, %v324, 0
  %v427 = vsel %vm374, %v325, 0
  %v430 = vsel %vm374, %v326, 0
  %v433 = vsel %vm374, %v327, 0
  %v436 = vsel %vm374, %v328, 0
  %v439 = vsel %vm374, %v329, 0
  %v442 = vsel %vm374, %v330, 0
  %v445 = vsel %vm374, %v331, 0
  %v448 = vsel %vm374, %v332, 0
  %v451 = vsel %vm374, %v333, 0
  %v454 = vsel %vm374, %v334, 0
  %v457 = vsel %vm374, %v335, 0
  %v460 = vsel %vm374, %v336, 0
  %v463 = vsel %vm374, %v337, 0
  %v466 = vsel %vm374, %v338, 0
  %v469 = vsel %vm374, %v339, 0
  %v472 = vsel %vm374, %v340, 0
  %v475 = vsel %vm374, %v341, 0
  %v478 = vsel %vm374, %v342, 0
  %v481 = vsel %vm374, %v343, 0
  %v484 = vsel %vm374, %v344, 0
  %v487 = vsel %vm374, %v345, 0
  %v490 = vsel %vm374, %v346, 0
  %v493 = vsel %vm374, %v347, 0
  %v496 = vsel %vm374, %v348, 0
  %v499 = vsel %vm374, %v349, 0
  %v502 = vsel %vm374, %v350, 0
  %v505 = vsel %vm374, %v351, 0
  %v508 = vsel %vm374, %v352, 0
  %v511 = vsel %vm374, %v353, 0
  %v514 = vsel %vm374, %v354, 0
  %v517 = vsel %vm374, %v355, 0
  %v520 = vsel %vm374, %v356, 0
  %v523 = vsel %vm374, %v357, 0
  %v526 = vsel %vm374, %v358, 0
  %v529 = vsel %vm374, %v359, 0
  %v532 = vsel %vm374, %v360, 0
  %v535 = vsel %vm374, %v361, 0
  %v538 = vsel %vm374, %v362, 0
  %v541 = vsel %vm374, %v363, 0
  %v544 = vsel %vm374, %v364, 0
  %v547 = vsel %vm374, %v365, 0
  %v550 = vsel %vm374, %v366, 0
  %v553 = vsel %vm374, %v367, 0
  %v556 = vsel %vm374, %v368, 0
  %v559 = vsel %vm374, %v369, 0
  %v562 = vsel %vm374, %v370, 0
  %v565 = vsel %vm374, %v371, 0
  %567 = vmatpush.msra.mxu0 0.0
  %568 = vmatpush.msra.mxu0 0.0
  %569 = vmatpush.msra.mxu0 0.0
  %570 = vmatpush.msra.mxu0 0.0
  %571 = vmatpush.msra.mxu0 0.0
  %572 = vmatpush.msra.mxu0 0.0
  %573 = vmatpush.msra.mxu0 0.0
  %574 = vmatpush.msra.mxu0 0.0
  %575 = vmatpush.msra.mxu0 0.0
  %576 = vmatpush.msra.mxu0 0.0
  %577 = vmatpush.msra.mxu0 0.0
  %578 = vmatpush.msra.mxu0 0.0
  %579 = vmatpush.msra.mxu0 0.0
  %580 = vmatpush.msra.mxu0 0.0
  %581 = vmatpush.msra.mxu0 %v373
  %582 = vmatpush.msra.mxu0 %v372
  %583 = vmatmul.f32.gmra.mxu0 %v376
  %v584 = vpop.f32.mrf.mxu0
  %v585 = vadd.f32 0.0, %v584
  %586 = vmatmul.f32.gmra.mxu0 %v379
  %v587 = vpop.f32.mrf.mxu0
  %v588 = vadd.f32 0.0, %v587
  %589 = vmatmul.f32.gmra.mxu0 %v382
  %v590 = vpop.f32.mrf.mxu0
  %v591 = vadd.f32 0.0, %v590
  %592 = vmatmul.f32.gmra.mxu0 %v385
  %v593 = vpop.f32.mrf.mxu0
  %v594 = vadd.f32 0.0, %v593
  %595 = vmatmul.f32.gmra.mxu0 %v388
  %v596 = vpop.f32.mrf.mxu0
  %v597 = vadd.f32 0.0, %v596
  %598 = vmatmul.f32.gmra.mxu0 %v391
  %v599 = vpop.f32.mrf.mxu0
  %v600 = vadd.f32 0.0, %v599
  %601 = vmatmul.f32.gmra.mxu0 %v394
  %v602 = vpop.f32.mrf.mxu0
  %v603 = vadd.f32 0.0, %v602
  %604 = vmatmul.f32.gmra.mxu0 %v397
  %v605 = vpop.f32.mrf.mxu0
  %v606 = vadd.f32 0.0, %v605
  %607 = vmatmul.f32.gmra.mxu0 %v400
  %v608 = vpop.f32.mrf.mxu0
  %v609 = vadd.f32 0.0, %v608
  %610 = vmatmul.f32.gmra.mxu0 %v403
  %v611 = vpop.f32.mrf.mxu0
  %v612 = vadd.f32 0.0, %v611
  %613 = vmatmul.f32.gmra.mxu0 %v406
  %v614 = vpop.f32.mrf.mxu0
  %v615 = vadd.f32 0.0, %v614
  %616 = vmatmul.f32.gmra.mxu0 %v409
  %v617 = vpop.f32.mrf.mxu0
  %v618 = vadd.f32 0.0, %v617
  %619 = vmatmul.f32.gmra.mxu0 %v412
  %v620 = vpop.f32.mrf.mxu0
  %v621 = vadd.f32 0.0, %v620
  %622 = vmatmul.f32.gmra.mxu0 %v415
  %v623 = vpop.f32.mrf.mxu0
  %v624 = vadd.f32 0.0, %v623
  %625 = vmatmul.f32.gmra.mxu0 %v418
  %v626 = vpop.f32.mrf.mxu0
  %v627 = vadd.f32 0.0, %v626
  %628 = vmatmul.f32.gmra.mxu0 %v421
  %v629 = vpop.f32.mrf.mxu0
  %v630 = vadd.f32 0.0, %v629
  %631 = vmatmul.f32.gmra.mxu0 %v424
  %v632 = vpop.f32.mrf.mxu0
  %v633 = vadd.f32 0.0, %v632
  %634 = vmatmul.f32.gmra.mxu0 %v427
  %v635 = vpop.f32.mrf.mxu0
  %v636 = vadd.f32 0.0, %v635
  %637 = vmatmul.f32.gmra.mxu0 %v430
  %v638 = vpop.f32.mrf.mxu0
  %v639 = vadd.f32 0.0, %v638
  %640 = vmatmul.f32.gmra.mxu0 %v433
  %v641 = vpop.f32.mrf.mxu0
  %v642 = vadd.f32 0.0, %v641
  %643 = vmatmul.f32.gmra.mxu0 %v436
  %v644 = vpop.f32.mrf.mxu0
  %v645 = vadd.f32 0.0, %v644
  %646 = vmatmul.f32.gmra.mxu0 %v439
  %v647 = vpop.f32.mrf.mxu0
  %v648 = vadd.f32 0.0, %v647
  %649 = vmatmul.f32.gmra.mxu0 %v442
  %v650 = vpop.f32.mrf.mxu0
  %v651 = vadd.f32 0.0, %v650
  %652 = vmatmul.f32.gmra.mxu0 %v445
  %v653 = vpop.f32.mrf.mxu0
  %v654 = vadd.f32 0.0, %v653
  %655 = vmatmul.f32.gmra.mxu0 %v448
  %v656 = vpop.f32.mrf.mxu0
  %v657 = vadd.f32 0.0, %v656
  %658 = vmatmul.f32.gmra.mxu0 %v451
  %v659 = vpop.f32.mrf.mxu0
  %v660 = vadd.f32 0.0, %v659
  %661 = vmatmul.f32.gmra.mxu0 %v454
  %v662 = vpop.f32.mrf.mxu0
  %v663 = vadd.f32 0.0, %v662
  %664 = vmatmul.f32.gmra.mxu0 %v457
  %v665 = vpop.f32.mrf.mxu0
  %v666 = vadd.f32 0.0, %v665
  %667 = vmatmul.f32.gmra.mxu0 %v460
  %v668 = vpop.f32.mrf.mxu0
  %v669 = vadd.f32 0.0, %v668
  %670 = vmatmul.f32.gmra.mxu0 %v463
  %v671 = vpop.f32.mrf.mxu0
  %v672 = vadd.f32 0.0, %v671
  %673 = vmatmul.f32.gmra.mxu0 %v466
  %v674 = vpop.f32.mrf.mxu0
  %v675 = vadd.f32 0.0, %v674
  %676 = vmatmul.f32.gmra.mxu0 %v469
  %v677 = vpop.f32.mrf.mxu0
  %v678 = vadd.f32 0.0, %v677
  %679 = vmatmul.f32.gmra.mxu0 %v472
  %v680 = vpop.f32.mrf.mxu0
  %v681 = vadd.f32 0.0, %v680
  %682 = vmatmul.f32.gmra.mxu0 %v475
  %v683 = vpop.f32.mrf.mxu0
  %v684 = vadd.f32 0.0, %v683
  %685 = vmatmul.f32.gmra.mxu0 %v478
  %v686 = vpop.f32.mrf.mxu0
  %v687 = vadd.f32 0.0, %v686
  %688 = vmatmul.f32.gmra.mxu0 %v481
  %v689 = vpop.f32.mrf.mxu0
  %v690 = vadd.f32 0.0, %v689
  %691 = vmatmul.f32.gmra.mxu0 %v484
  %v692 = vpop.f32.mrf.mxu0
  %v693 = vadd.f32 0.0, %v692
  %694 = vmatmul.f32.gmra.mxu0 %v487
  %v695 = vpop.f32.mrf.mxu0
  %v696 = vadd.f32 0.0, %v695
  %697 = vmatmul.f32.gmra.mxu0 %v490
  %v698 = vpop.f32.mrf.mxu0
  %v699 = vadd.f32 0.0, %v698
  %700 = vmatmul.f32.gmra.mxu0 %v493
  %v701 = vpop.f32.mrf.mxu0
  %v702 = vadd.f32 0.0, %v701
  %703 = vmatmul.f32.gmra.mxu0 %v496
  %v704 = vpop.f32.mrf.mxu0
  %v705 = vadd.f32 0.0, %v704
  %706 = vmatmul.f32.gmra.mxu0 %v499
  %v707 = vpop.f32.mrf.mxu0
  %v708 = vadd.f32 0.0, %v707
  %709 = vmatmul.f32.gmra.mxu0 %v502
  %v710 = vpop.f32.mrf.mxu0
  %v711 = vadd.f32 0.0, %v710
  %712 = vmatmul.f32.gmra.mxu0 %v505
  %v713 = vpop.f32.mrf.mxu0
  %v714 = vadd.f32 0.0, %v713
  %715 = vmatmul.f32.gmra.mxu0 %v508
  %v716 = vpop.f32.mrf.mxu0
  %v717 = vadd.f32 0.0, %v716
  %718 = vmatmul.f32.gmra.mxu0 %v511
  %v719 = vpop.f32.mrf.mxu0
  %v720 = vadd.f32 0.0, %v719
  %721 = vmatmul.f32.gmra.mxu0 %v514
  %v722 = vpop.f32.mrf.mxu0
  %v723 = vadd.f32 0.0, %v722
  %724 = vmatmul.f32.gmra.mxu0 %v517
  %v725 = vpop.f32.mrf.mxu0
  %v726 = vadd.f32 0.0, %v725
  %727 = vmatmul.f32.gmra.mxu0 %v520
  %v728 = vpop.f32.mrf.mxu0
  %v729 = vadd.f32 0.0, %v728
  %730 = vmatmul.f32.gmra.mxu0 %v523
  %v731 = vpop.f32.mrf.mxu0
  %v732 = vadd.f32 0.0, %v731
  %733 = vmatmul.f32.gmra.mxu0 %v526
  %v734 = vpop.f32.mrf.mxu0
  %v735 = vadd.f32 0.0, %v734
  %736 = vmatmul.f32.gmra.mxu0 %v529
  %v737 = vpop.f32.mrf.mxu0
  %v738 = vadd.f32 0.0, %v737
  %739 = vmatmul.f32.gmra.mxu0 %v532
  %v740 = vpop.f32.mrf.mxu0
  %v741 = vadd.f32 0.0, %v740
  %742 = vmatmul.f32.gmra.mxu0 %v535
  %v743 = vpop.f32.mrf.mxu0
  %v744 = vadd.f32 0.0, %v743
  %745 = vmatmul.f32.gmra.mxu0 %v538
  %v746 = vpop.f32.mrf.mxu0
  %v747 = vadd.f32 0.0, %v746
  %748 = vmatmul.f32.gmra.mxu0 %v541
  %v749 = vpop.f32.mrf.mxu0
  %v750 = vadd.f32 0.0, %v749
  %751 = vmatmul.f32.gmra.mxu0 %v544
  %v752 = vpop.f32.mrf.mxu0
  %v753 = vadd.f32 0.0, %v752
  %754 = vmatmul.f32.gmra.mxu0 %v547
  %v755 = vpop.f32.mrf.mxu0
  %v756 = vadd.f32 0.0, %v755
  %757 = vmatmul.f32.gmra.mxu0 %v550
  %v758 = vpop.f32.mrf.mxu0
  %v759 = vadd.f32 0.0, %v758
  %760 = vmatmul.f32.gmra.mxu0 %v553
  %v761 = vpop.f32.mrf.mxu0
  %v762 = vadd.f32 0.0, %v761
  %763 = vmatmul.f32.gmra.mxu0 %v556
  %v764 = vpop.f32.mrf.mxu0
  %v765 = vadd.f32 0.0, %v764
  %766 = vmatmul.f32.gmra.mxu0 %v559
  %v767 = vpop.f32.mrf.mxu0
  %v768 = vadd.f32 0.0, %v767
  %769 = vmatmul.f32.gmra.mxu0 %v562
  %v770 = vpop.f32.mrf.mxu0
  %v771 = vadd.f32 0.0, %v770
  %772 = vmatmul.f32.gmra.mxu0 %v565
  %v773 = vpop.f32.mrf.mxu0
  %v774 = vadd.f32 0.0, %v773
  %775 = vdwg.mxu0
  %v840 = vrot.slane %v585, 4
  %v841 = vrot.slane %v588, 4
  %v842 = vrot.slane %v591, 4
  %v843 = vrot.slane %v594, 4
  %v844 = vrot.slane %v597, 4
  %v845 = vrot.slane %v600, 4
  %v846 = vrot.slane %v603, 4
  %v847 = vrot.slane %v606, 4
  %v848 = vrot.slane %v609, 4
  %v849 = vrot.slane %v612, 4
  %v850 = vrot.slane %v615, 4
  %v851 = vrot.slane %v618, 4
  %v852 = vrot.slane %v621, 4
  %v853 = vrot.slane %v624, 4
  %v854 = vrot.slane %v627, 4
  %v855 = vrot.slane %v630, 4
  %v856 = vrot.slane %v633, 4
  %v857 = vrot.slane %v636, 4
  %v858 = vrot.slane %v639, 4
  %v859 = vrot.slane %v642, 4
  %v860 = vrot.slane %v645, 4
  %v861 = vrot.slane %v648, 4
  %v862 = vrot.slane %v651, 4
  %v863 = vrot.slane %v654, 4
  %v864 = vrot.slane %v657, 4
  %v865 = vrot.slane %v660, 4
  %v866 = vrot.slane %v663, 4
  %v867 = vrot.slane %v666, 4
  %v868 = vrot.slane %v669, 4
  %v869 = vrot.slane %v672, 4
  %v870 = vrot.slane %v675, 4
  %v871 = vrot.slane %v678, 4
  %v872 = vrot.slane %v681, 4
  %v873 = vrot.slane %v684, 4
  %v874 = vrot.slane %v687, 4
  %v875 = vrot.slane %v690, 4
  %v876 = vrot.slane %v693, 4
  %v877 = vrot.slane %v696, 4
  %v878 = vrot.slane %v699, 4
  %v879 = vrot.slane %v702, 4
  %v880 = vrot.slane %v705, 4
  %v881 = vrot.slane %v708, 4
  %v882 = vrot.slane %v711, 4
  %v883 = vrot.slane %v714, 4
  %v884 = vrot.slane %v717, 4
  %v885 = vrot.slane %v720, 4
  %v886 = vrot.slane %v723, 4
  %v887 = vrot.slane %v726, 4
  %v888 = vrot.slane %v729, 4
  %v889 = vrot.slane %v732, 4
  %v890 = vrot.slane %v735, 4
  %v891 = vrot.slane %v738, 4
  %v892 = vrot.slane %v741, 4
  %v893 = vrot.slane %v744, 4
  %v894 = vrot.slane %v747, 4
  %v895 = vrot.slane %v750, 4
  %v896 = vrot.slane %v753, 4
  %v897 = vrot.slane %v756, 4
  %v898 = vrot.slane %v759, 4
  %v899 = vrot.slane %v762, 4
  %v900 = vrot.slane %v765, 4
  %v901 = vrot.slane %v768, 4
  %v902 = vrot.slane %v771, 4
  %v903 = vrot.slane %v774, 4
  %v968 = vld [vmem:[%s4] sm:$0x1]
  %v970 = vperm.slane %v968, 0
  %v972 = vadd.f32 %v585, %v970
  %v973 = vadd.f32 %v840, %v970
  %v974 = vadd.f32 %v588, %v970
  %v975 = vadd.f32 %v841, %v970
  %v976 = vadd.f32 %v591, %v970
  %v977 = vadd.f32 %v842, %v970
  %v978 = vadd.f32 %v594, %v970
  %v979 = vadd.f32 %v843, %v970
  %v980 = vadd.f32 %v597, %v970
  %v981 = vadd.f32 %v844, %v970
  %v982 = vadd.f32 %v600, %v970
  %v983 = vadd.f32 %v845, %v970
  %v984 = vadd.f32 %v603, %v970
  %v985 = vadd.f32 %v846, %v970
  %v986 = vadd.f32 %v606, %v970
  %v987 = vadd.f32 %v847, %v970
  %v988 = vadd.f32 %v609, %v970
  %v989 = vadd.f32 %v848, %v970
  %v990 = vadd.f32 %v612, %v970
  %v991 = vadd.f32 %v849, %v970
  %v992 = vadd.f32 %v615, %v970
  %v993 = vadd.f32 %v850, %v970
  %v994 = vadd.f32 %v618, %v970
  %v995 = vadd.f32 %v851, %v970
  %v996 = vadd.f32 %v621, %v970
  %v997 = vadd.f32 %v852, %v970
  %v998 = vadd.f32 %v624, %v970
  %v999 = vadd.f32 %v853, %v970
  %v1000 = vadd.f32 %v627, %v970
  %v1001 = vadd.f32 %v854, %v970
  %v1002 = vadd.f32 %v630, %v970
  %v1003 = vadd.f32 %v855, %v970
  %v1004 = vadd.f32 %v633, %v970
  %v1005 = vadd.f32 %v856, %v970
  %v1006 = vadd.f32 %v636, %v970
  %v1007 = vadd.f32 %v857, %v970
  %v1008 = vadd.f32 %v639, %v970
  %v1009 = vadd.f32 %v858, %v970
  %v1010 = vadd.f32 %v642, %v970
  %v1011 = vadd.f32 %v859, %v970
  %v1012 = vadd.f32 %v645, %v970
  %v1013 = vadd.f32 %v860, %v970
  %v1014 = vadd.f32 %v648, %v970
  %v1015 = vadd.f32 %v861, %v970
  %v1016 = vadd.f32 %v651, %v970
  %v1017 = vadd.f32 %v862, %v970
  %v1018 = vadd.f32 %v654, %v970
  %v1019 = vadd.f32 %v863, %v970
  %v1020 = vadd.f32 %v657, %v970
  %v1021 = vadd.f32 %v864, %v970
  %v1022 = vadd.f32 %v660, %v970
  %v1023 = vadd.f32 %v865, %v970
  %v1024 = vadd.f32 %v663, %v970
  %v1025 = vadd.f32 %v866, %v970
  %v1026 = vadd.f32 %v666, %v970
  %v1027 = vadd.f32 %v867, %v970
  %v1028 = vadd.f32 %v669, %v970
  %v1029 = vadd.f32 %v868, %v970
  %v1030 = vadd.f32 %v672, %v970
  %v1031 = vadd.f32 %v869, %v970
  %v1032 = vadd.f32 %v675, %v970
  %v1033 = vadd.f32 %v870, %v970
  %v1034 = vadd.f32 %v678, %v970
  %v1035 = vadd.f32 %v871, %v970
  %v1036 = vadd.f32 %v681, %v970
  %v1037 = vadd.f32 %v872, %v970
  %v1038 = vadd.f32 %v684, %v970
  %v1039 = vadd.f32 %v873, %v970
  %v1040 = vadd.f32 %v687, %v970
  %v1041 = vadd.f32 %v874, %v970
  %v1042 = vadd.f32 %v690, %v970
  %v1043 = vadd.f32 %v875, %v970
  %v1044 = vadd.f32 %v693, %v970
  %v1045 = vadd.f32 %v876, %v970
  %v1046 = vadd.f32 %v696, %v970
  %v1047 = vadd.f32 %v877, %v970
  %v1048 = vadd.f32 %v699, %v970
  %v1049 = vadd.f32 %v878, %v970
  %v1050 = vadd.f32 %v702, %v970
  %v1051 = vadd.f32 %v879, %v970
  %v1052 = vadd.f32 %v705, %v970
  %v1053 = vadd.f32 %v880, %v970
  %v1054 = vadd.f32 %v708, %v970
  %v1055 = vadd.f32 %v881, %v970
  %v1056 = vadd.f32 %v711, %v970
  %v1057 = vadd.f32 %v882, %v970
  %v1058 = vadd.f32 %v714, %v970
  %v1059 = vadd.f32 %v883, %v970
  %v1060 = vadd.f32 %v717, %v970
  %v1061 = vadd.f32 %v884, %v970
  %v1062 = vadd.f32 %v720, %v970
  %v1063 = vadd.f32 %v885, %v970
  %v1064 = vadd.f32 %v723, %v970
  %v1065 = vadd.f32 %v886, %v970
  %v1066 = vadd.f32 %v726, %v970
  %v1067 = vadd.f32 %v887, %v970
  %v1068 = vadd.f32 %v729, %v970
  %v1069 = vadd.f32 %v888, %v970
  %v1070 = vadd.f32 %v732, %v970
  %v1071 = vadd.f32 %v889, %v970
  %v1072 = vadd.f32 %v735, %v970
  %v1073 = vadd.f32 %v890, %v970
  %v1074 = vadd.f32 %v738, %v970
  %v1075 = vadd.f32 %v891, %v970
  %v1076 = vadd.f32 %v741, %v970
  %v1077 = vadd.f32 %v892, %v970
  %v1078 = vadd.f32 %v744, %v970
  %v1079 = vadd.f32 %v893, %v970
  %v1080 = vadd.f32 %v747, %v970
  %v1081 = vadd.f32 %v894, %v970
  %v1082 = vadd.f32 %v750, %v970
  %v1083 = vadd.f32 %v895, %v970
  %v1084 = vadd.f32 %v753, %v970
  %v1085 = vadd.f32 %v896, %v970
  %v1086 = vadd.f32 %v756, %v970
  %v1087 = vadd.f32 %v897, %v970
  %v1088 = vadd.f32 %v759, %v970
  %v1089 = vadd.f32 %v898, %v970
  %v1090 = vadd.f32 %v762, %v970
  %v1091 = vadd.f32 %v899, %v970
  %v1092 = vadd.f32 %v765, %v970
  %v1093 = vadd.f32 %v900, %v970
  %v1094 = vadd.f32 %v768, %v970
  %v1095 = vadd.f32 %v901, %v970
  %v1096 = vadd.f32 %v771, %v970
  %v1097 = vadd.f32 %v902, %v970
  %v1098 = vadd.f32 %v774, %v970
  %v1099 = vadd.f32 %v903, %v970
  %v1100 = vmul.f32 %v972, %v972
  %v1101 = vmul.f32 %v973, %v973
  %v1102 = vmul.f32 %v974, %v974
  %v1103 = vmul.f32 %v975, %v975
  %v1104 = vmul.f32 %v976, %v976
  %v1105 = vmul.f32 %v977, %v977
  %v1106 = vmul.f32 %v978, %v978
  %v1107 = vmul.f32 %v979, %v979
  %v1108 = vmul.f32 %v980, %v980
  %v1109 = vmul.f32 %v981, %v981
  %v1110 = vmul.f32 %v982, %v982
  %v1111 = vmul.f32 %v983, %v983
  %v1112 = vmul.f32 %v984, %v984
  %v1113 = vmul.f32 %v985, %v985
  %v1114 = vmul.f32 %v986, %v986
  %v1115 = vmul.f32 %v987, %v987
  %v1116 = vmul.f32 %v988, %v988
  %v1117 = vmul.f32 %v989, %v989
  %v1118 = vmul.f32 %v990, %v990
  %v1119 = vmul.f32 %v991, %v991
  %v1120 = vmul.f32 %v992, %v992
  %v1121 = vmul.f32 %v993, %v993
  %v1122 = vmul.f32 %v994, %v994
  %v1123 = vmul.f32 %v995, %v995
  %v1124 = vmul.f32 %v996, %v996
  %v1125 = vmul.f32 %v997, %v997
  %v1126 = vmul.f32 %v998, %v998
  %v1127 = vmul.f32 %v999, %v999
  %v1128 = vmul.f32 %v1000, %v1000
  %v1129 = vmul.f32 %v1001, %v1001
  %v1130 = vmul.f32 %v1002, %v1002
  %v1131 = vmul.f32 %v1003, %v1003
  %v1132 = vmul.f32 %v1004, %v1004
  %v1133 = vmul.f32 %v1005, %v1005
  %v1134 = vmul.f32 %v1006, %v1006
  %v1135 = vmul.f32 %v1007, %v1007
  %v1136 = vmul.f32 %v1008, %v1008
  %v1137 = vmul.f32 %v1009, %v1009
  %v1138 = vmul.f32 %v1010, %v1010
  %v1139 = vmul.f32 %v1011, %v1011
  %v1140 = vmul.f32 %v1012, %v1012
  %v1141 = vmul.f32 %v1013, %v1013
  %v1142 = vmul.f32 %v1014, %v1014
  %v1143 = vmul.f32 %v1015, %v1015
  %v1144 = vmul.f32 %v1016, %v1016
  %v1145 = vmul.f32 %v1017, %v1017
  %v1146 = vmul.f32 %v1018, %v1018
  %v1147 = vmul.f32 %v1019, %v1019
  %v1148 = vmul.f32 %v1020, %v1020
  %v1149 = vmul.f32 %v1021, %v1021
  %v1150 = vmul.f32 %v1022, %v1022
  %v1151 = vmul.f32 %v1023, %v1023
  %v1152 = vmul.f32 %v1024, %v1024
  %v1153 = vmul.f32 %v1025, %v1025
  %v1154 = vmul.f32 %v1026, %v1026
  %v1155 = vmul.f32 %v1027, %v1027
  %v1156 = vmul.f32 %v1028, %v1028
  %v1157 = vmul.f32 %v1029, %v1029
  %v1158 = vmul.f32 %v1030, %v1030
  %v1159 = vmul.f32 %v1031, %v1031
  %v1160 = vmul.f32 %v1032, %v1032
  %v1161 = vmul.f32 %v1033, %v1033
  %v1162 = vmul.f32 %v1034, %v1034
  %v1163 = vmul.f32 %v1035, %v1035
  %v1164 = vmul.f32 %v1036, %v1036
  %v1165 = vmul.f32 %v1037, %v1037
  %v1166 = vmul.f32 %v1038, %v1038
  %v1167 = vmul.f32 %v1039, %v1039
  %v1168 = vmul.f32 %v1040, %v1040
  %v1169 = vmul.f32 %v1041, %v1041
  %v1170 = vmul.f32 %v1042, %v1042
  %v1171 = vmul.f32 %v1043, %v1043
  %v1172 = vmul.f32 %v1044, %v1044
  %v1173 = vmul.f32 %v1045, %v1045
  %v1174 = vmul.f32 %v1046, %v1046
  %v1175 = vmul.f32 %v1047, %v1047
  %v1176 = vmul.f32 %v1048, %v1048
  %v1177 = vmul.f32 %v1049, %v1049
  %v1178 = vmul.f32 %v1050, %v1050
  %v1179 = vmul.f32 %v1051, %v1051
  %v1180 = vmul.f32 %v1052, %v1052
  %v1181 = vmul.f32 %v1053, %v1053
  %v1182 = vmul.f32 %v1054, %v1054
  %v1183 = vmul.f32 %v1055, %v1055
  %v1184 = vmul.f32 %v1056, %v1056
  %v1185 = vmul.f32 %v1057, %v1057
  %v1186 = vmul.f32 %v1058, %v1058
  %v1187 = vmul.f32 %v1059, %v1059
  %v1188 = vmul.f32 %v1060, %v1060
  %v1189 = vmul.f32 %v1061, %v1061
  %v1190 = vmul.f32 %v1062, %v1062
  %v1191 = vmul.f32 %v1063, %v1063
  %v1192 = vmul.f32 %v1064, %v1064
  %v1193 = vmul.f32 %v1065, %v1065
  %v1194 = vmul.f32 %v1066, %v1066
  %v1195 = vmul.f32 %v1067, %v1067
  %v1196 = vmul.f32 %v1068, %v1068
  %v1197 = vmul.f32 %v1069, %v1069
  %v1198 = vmul.f32 %v1070, %v1070
  %v1199 = vmul.f32 %v1071, %v1071
  %v1200 = vmul.f32 %v1072, %v1072
  %v1201 = vmul.f32 %v1073, %v1073
  %v1202 = vmul.f32 %v1074, %v1074
  %v1203 = vmul.f32 %v1075, %v1075
  %v1204 = vmul.f32 %v1076, %v1076
  %v1205 = vmul.f32 %v1077, %v1077
  %v1206 = vmul.f32 %v1078, %v1078
  %v1207 = vmul.f32 %v1079, %v1079
  %v1208 = vmul.f32 %v1080, %v1080
  %v1209 = vmul.f32 %v1081, %v1081
  %v1210 = vmul.f32 %v1082, %v1082
  %v1211 = vmul.f32 %v1083, %v1083
  %v1212 = vmul.f32 %v1084, %v1084
  %v1213 = vmul.f32 %v1085, %v1085
  %v1214 = vmul.f32 %v1086, %v1086
  %v1215 = vmul.f32 %v1087, %v1087
  %v1216 = vmul.f32 %v1088, %v1088
  %v1217 = vmul.f32 %v1089, %v1089
  %v1218 = vmul.f32 %v1090, %v1090
  %v1219 = vmul.f32 %v1091, %v1091
  %v1220 = vmul.f32 %v1092, %v1092
  %v1221 = vmul.f32 %v1093, %v1093
  %v1222 = vmul.f32 %v1094, %v1094
  %v1223 = vmul.f32 %v1095, %v1095
  %v1224 = vmul.f32 %v1096, %v1096
  %v1225 = vmul.f32 %v1097, %v1097
  %v1226 = vmul.f32 %v1098, %v1098
  %v1227 = vmul.f32 %v1099, %v1099
  %vm1228 = vcmask 191488
  %v1229 = vsel %vm1228, %v1100, 0.0
  %v1230 = vsel %vm1228, %v1101, 0.0
  %v1231 = vadd.f32 %v1229, %v1230
  %v1232 = vsel %vm1228, %v1102, 0.0
  %v1233 = vadd.f32 %v1231, %v1232
  %v1234 = vsel %vm1228, %v1103, 0.0
  %v1235 = vadd.f32 %v1233, %v1234
  %v1236 = vsel %vm1228, %v1104, 0.0
  %v1237 = vadd.f32 %v1235, %v1236
  %v1238 = vsel %vm1228, %v1105, 0.0
  %v1239 = vadd.f32 %v1237, %v1238
  %v1240 = vsel %vm1228, %v1106, 0.0
  %v1241 = vadd.f32 %v1239, %v1240
  %v1242 = vsel %vm1228, %v1107, 0.0
  %v1243 = vadd.f32 %v1241, %v1242
  %v1244 = vsel %vm1228, %v1108, 0.0
  %v1245 = vadd.f32 %v1243, %v1244
  %v1246 = vsel %vm1228, %v1109, 0.0
  %v1247 = vadd.f32 %v1245, %v1246
  %v1248 = vsel %vm1228, %v1110, 0.0
  %v1249 = vadd.f32 %v1247, %v1248
  %v1250 = vsel %vm1228, %v1111, 0.0
  %v1251 = vadd.f32 %v1249, %v1250
  %v1252 = vsel %vm1228, %v1112, 0.0
  %v1253 = vadd.f32 %v1251, %v1252
  %v1254 = vsel %vm1228, %v1113, 0.0
  %v1255 = vadd.f32 %v1253, %v1254
  %v1256 = vsel %vm1228, %v1114, 0.0
  %v1257 = vadd.f32 %v1255, %v1256
  %v1258 = vsel %vm1228, %v1115, 0.0
  %v1259 = vadd.f32 %v1257, %v1258
  %v1260 = vsel %vm1228, %v1116, 0.0
  %v1261 = vsel %vm1228, %v1117, 0.0
  %v1262 = vadd.f32 %v1260, %v1261
  %v1263 = vsel %vm1228, %v1118, 0.0
  %v1264 = vadd.f32 %v1262, %v1263
  %v1265 = vsel %vm1228, %v1119, 0.0
  %v1266 = vadd.f32 %v1264, %v1265
  %v1267 = vsel %vm1228, %v1120, 0.0
  %v1268 = vadd.f32 %v1266, %v1267
  %v1269 = vsel %vm1228, %v1121, 0.0
  %v1270 = vadd.f32 %v1268, %v1269
  %v1271 = vsel %vm1228, %v1122, 0.0
  %v1272 = vadd.f32 %v1270, %v1271
  %v1273 = vsel %vm1228, %v1123, 0.0
  %v1274 = vadd.f32 %v1272, %v1273
  %v1275 = vsel %vm1228, %v1124, 0.0
  %v1276 = vadd.f32 %v1274, %v1275
  %v1277 = vsel %vm1228, %v1125, 0.0
  %v1278 = vadd.f32 %v1276, %v1277
  %v1279 = vsel %vm1228, %v1126, 0.0
  %v1280 = vadd.f32 %v1278, %v1279
  %v1281 = vsel %vm1228, %v1127, 0.0
  %v1282 = vadd.f32 %v1280, %v1281
  %v1283 = vsel %vm1228, %v1128, 0.0
  %v1284 = vadd.f32 %v1282, %v1283
  %v1285 = vsel %vm1228, %v1129, 0.0
  %v1286 = vadd.f32 %v1284, %v1285
  %v1287 = vsel %vm1228, %v1130, 0.0
  %v1288 = vadd.f32 %v1286, %v1287
  %v1289 = vsel %vm1228, %v1131, 0.0
  %v1290 = vadd.f32 %v1288, %v1289
  %v1291 = vsel %vm1228, %v1132, 0.0
  %v1292 = vsel %vm1228, %v1133, 0.0
  %v1293 = vadd.f32 %v1291, %v1292
  %v1294 = vsel %vm1228, %v1134, 0.0
  %v1295 = vadd.f32 %v1293, %v1294
  %v1296 = vsel %vm1228, %v1135, 0.0
  %v1297 = vadd.f32 %v1295, %v1296
  %v1298 = vsel %vm1228, %v1136, 0.0
  %v1299 = vadd.f32 %v1297, %v1298
  %v1300 = vsel %vm1228, %v1137, 0.0
  %v1301 = vadd.f32 %v1299, %v1300
  %v1302 = vsel %vm1228, %v1138, 0.0
  %v1303 = vadd.f32 %v1301, %v1302
  %v1304 = vsel %vm1228, %v1139, 0.0
  %v1305 = vadd.f32 %v1303, %v1304
  %v1306 = vsel %vm1228, %v1140, 0.0
  %v1307 = vadd.f32 %v1305, %v1306
  %v1308 = vsel %vm1228, %v1141, 0.0
  %v1309 = vadd.f32 %v1307, %v1308
  %v1310 = vsel %vm1228, %v1142, 0.0
  %v1311 = vadd.f32 %v1309, %v1310
  %v1312 = vsel %vm1228, %v1143, 0.0
  %v1313 = vadd.f32 %v1311, %v1312
  %v1314 = vsel %vm1228, %v1144, 0.0
  %v1315 = vadd.f32 %v1313, %v1314
  %v1316 = vsel %vm1228, %v1145, 0.0
  %v1317 = vadd.f32 %v1315, %v1316
  %v1318 = vsel %vm1228, %v1146, 0.0
  %v1319 = vadd.f32 %v1317, %v1318
  %v1320 = vsel %vm1228, %v1147, 0.0
  %v1321 = vadd.f32 %v1319, %v1320
  %v1322 = vsel %vm1228, %v1148, 0.0
  %v1323 = vsel %vm1228, %v1149, 0.0
  %v1324 = vadd.f32 %v1322, %v1323
  %v1325 = vsel %vm1228, %v1150, 0.0
  %v1326 = vadd.f32 %v1324, %v1325
  %v1327 = vsel %vm1228, %v1151, 0.0
  %v1328 = vadd.f32 %v1326, %v1327
  %v1329 = vsel %vm1228, %v1152, 0.0
  %v1330 = vadd.f32 %v1328, %v1329
  %v1331 = vsel %vm1228, %v1153, 0.0
  %v1332 = vadd.f32 %v1330, %v1331
  %v1333 = vsel %vm1228, %v1154, 0.0
  %v1334 = vadd.f32 %v1332, %v1333
  %v1335 = vsel %vm1228, %v1155, 0.0
  %v1336 = vadd.f32 %v1334, %v1335
  %v1337 = vsel %vm1228, %v1156, 0.0
  %v1338 = vadd.f32 %v1336, %v1337
  %v1339 = vsel %vm1228, %v1157, 0.0
  %v1340 = vadd.f32 %v1338, %v1339
  %v1341 = vsel %vm1228, %v1158, 0.0
  %v1342 = vadd.f32 %v1340, %v1341
  %v1343 = vsel %vm1228, %v1159, 0.0
  %v1344 = vadd.f32 %v1342, %v1343
  %v1345 = vsel %vm1228, %v1160, 0.0
  %v1346 = vadd.f32 %v1344, %v1345
  %v1347 = vsel %vm1228, %v1161, 0.0
  %v1348 = vadd.f32 %v1346, %v1347
  %v1349 = vsel %vm1228, %v1162, 0.0
  %v1350 = vadd.f32 %v1348, %v1349
  %v1351 = vsel %vm1228, %v1163, 0.0
  %v1352 = vadd.f32 %v1350, %v1351
  %v1353 = vsel %vm1228, %v1164, 0.0
  %v1354 = vsel %vm1228, %v1165, 0.0
  %v1355 = vadd.f32 %v1353, %v1354
  %v1356 = vsel %vm1228, %v1166, 0.0
  %v1357 = vadd.f32 %v1355, %v1356
  %v1358 = vsel %vm1228, %v1167, 0.0
  %v1359 = vadd.f32 %v1357, %v1358
  %v1360 = vsel %vm1228, %v1168, 0.0
  %v1361 = vadd.f32 %v1359, %v1360
  %v1362 = vsel %vm1228, %v1169, 0.0
  %v1363 = vadd.f32 %v1361, %v1362
  %v1364 = vsel %vm1228, %v1170, 0.0
  %v1365 = vadd.f32 %v1363, %v1364
  %v1366 = vsel %vm1228, %v1171, 0.0
  %v1367 = vadd.f32 %v1365, %v1366
  %v1368 = vsel %vm1228, %v1172, 0.0
  %v1369 = vadd.f32 %v1367, %v1368
  %v1370 = vsel %vm1228, %v1173, 0.0
  %v1371 = vadd.f32 %v1369, %v1370
  %v1372 = vsel %vm1228, %v1174, 0.0
  %v1373 = vadd.f32 %v1371, %v1372
  %v1374 = vsel %vm1228, %v1175, 0.0
  %v1375 = vadd.f32 %v1373, %v1374
  %v1376 = vsel %vm1228, %v1176, 0.0
  %v1377 = vadd.f32 %v1375, %v1376
  %v1378 = vsel %vm1228, %v1177, 0.0
  %v1379 = vadd.f32 %v1377, %v1378
  %v1380 = vsel %vm1228, %v1178, 0.0
  %v1381 = vadd.f32 %v1379, %v1380
  %v1382 = vsel %vm1228, %v1179, 0.0
  %v1383 = vadd.f32 %v1381, %v1382
  %v1384 = vsel %vm1228, %v1180, 0.0
  %v1385 = vsel %vm1228, %v1181, 0.0
  %v1386 = vadd.f32 %v1384, %v1385
  %v1387 = vsel %vm1228, %v1182, 0.0
  %v1388 = vadd.f32 %v1386, %v1387
  %v1389 = vsel %vm1228, %v1183, 0.0
  %v1390 = vadd.f32 %v1388, %v1389
  %v1391 = vsel %vm1228, %v1184, 0.0
  %v1392 = vadd.f32 %v1390, %v1391
  %v1393 = vsel %vm1228, %v1185, 0.0
  %v1394 = vadd.f32 %v1392, %v1393
  %v1395 = vsel %vm1228, %v1186, 0.0
  %v1396 = vadd.f32 %v1394, %v1395
  %v1397 = vsel %vm1228, %v1187, 0.0
  %v1398 = vadd.f32 %v1396, %v1397
  %v1399 = vsel %vm1228, %v1188, 0.0
  %v1400 = vadd.f32 %v1398, %v1399
  %v1401 = vsel %vm1228, %v1189, 0.0
  %v1402 = vadd.f32 %v1400, %v1401
  %v1403 = vsel %vm1228, %v1190, 0.0
  %v1404 = vadd.f32 %v1402, %v1403
  %v1405 = vsel %vm1228, %v1191, 0.0
  %v1406 = vadd.f32 %v1404, %v1405
  %v1407 = vsel %vm1228, %v1192, 0.0
  %v1408 = vadd.f32 %v1406, %v1407
  %v1409 = vsel %vm1228, %v1193, 0.0
  %v1410 = vadd.f32 %v1408, %v1409
  %v1411 = vsel %vm1228, %v1194, 0.0
  %v1412 = vadd.f32 %v1410, %v1411
  %v1413 = vsel %vm1228, %v1195, 0.0
  %v1414 = vadd.f32 %v1412, %v1413
  %v1415 = vsel %vm1228, %v1196, 0.0
  %v1416 = vsel %vm1228, %v1197, 0.0
  %v1417 = vadd.f32 %v1415, %v1416
  %v1418 = vsel %vm1228, %v1198, 0.0
  %v1419 = vadd.f32 %v1417, %v1418
  %v1420 = vsel %vm1228, %v1199, 0.0
  %v1421 = vadd.f32 %v1419, %v1420
  %v1422 = vsel %vm1228, %v1200, 0.0
  %v1423 = vadd.f32 %v1421, %v1422
  %v1424 = vsel %vm1228, %v1201, 0.0
  %v1425 = vadd.f32 %v1423, %v1424
  %v1426 = vsel %vm1228, %v1202, 0.0
  %v1427 = vadd.f32 %v1425, %v1426
  %v1428 = vsel %vm1228, %v1203, 0.0
  %v1429 = vadd.f32 %v1427, %v1428
  %v1430 = vsel %vm1228, %v1204, 0.0
  %v1431 = vadd.f32 %v1429, %v1430
  %v1432 = vsel %vm1228, %v1205, 0.0
  %v1433 = vadd.f32 %v1431, %v1432
  %v1434 = vsel %vm1228, %v1206, 0.0
  %v1435 = vadd.f32 %v1433, %v1434
  %v1436 = vsel %vm1228, %v1207, 0.0
  %v1437 = vadd.f32 %v1435, %v1436
  %v1438 = vsel %vm1228, %v1208, 0.0
  %v1439 = vadd.f32 %v1437, %v1438
  %v1440 = vsel %vm1228, %v1209, 0.0
  %v1441 = vadd.f32 %v1439, %v1440
  %v1442 = vsel %vm1228, %v1210, 0.0
  %v1443 = vadd.f32 %v1441, %v1442
  %v1444 = vsel %vm1228, %v1211, 0.0
  %v1445 = vadd.f32 %v1443, %v1444
  %v1446 = vsel %vm1228, %v1212, 0.0
  %v1447 = vsel %vm1228, %v1213, 0.0
  %v1448 = vadd.f32 %v1446, %v1447
  %v1449 = vsel %vm1228, %v1214, 0.0
  %v1450 = vadd.f32 %v1448, %v1449
  %v1451 = vsel %vm1228, %v1215, 0.0
  %v1452 = vadd.f32 %v1450, %v1451
  %v1453 = vsel %vm1228, %v1216, 0.0
  %v1454 = vadd.f32 %v1452, %v1453
  %v1455 = vsel %vm1228, %v1217, 0.0
  %v1456 = vadd.f32 %v1454, %v1455
  %v1457 = vsel %vm1228, %v1218, 0.0
  %v1458 = vadd.f32 %v1456, %v1457
  %v1459 = vsel %vm1228, %v1219, 0.0
  %v1460 = vadd.f32 %v1458, %v1459
  %v1461 = vsel %vm1228, %v1220, 0.0
  %v1462 = vadd.f32 %v1460, %v1461
  %v1463 = vsel %vm1228, %v1221, 0.0
  %v1464 = vadd.f32 %v1462, %v1463
  %v1465 = vsel %vm1228, %v1222, 0.0
  %v1466 = vadd.f32 %v1464, %v1465
  %v1467 = vsel %vm1228, %v1223, 0.0
  %v1468 = vadd.f32 %v1466, %v1467
  %v1469 = vsel %vm1228, %v1224, 0.0
  %v1470 = vadd.f32 %v1468, %v1469
  %v1471 = vsel %vm1228, %v1225, 0.0
  %v1472 = vadd.f32 %v1470, %v1471
  %v1473 = vsel %vm1228, %v1226, 0.0
  %v1474 = vadd.f32 %v1472, %v1473
  %v1475 = vsel %vm1228, %v1227, 0.0
  %v1476 = vadd.f32 %v1474, %v1475
  %v1477 = vrsqrt.pop %v1259
  %v1478 = vmul.f32 %v1477, %v1259
  %v1479 = vmul.f32 %v1478, %v1477
  %v1480 = vmul.f32 0.5, %v1479
  %v1481 = vsub.f32 1.5, %v1480
  %v1482 = vmul.f32 %v1477, %v1481
  %vm1483 = vweird.f32 %v1259
  %vm1484 = vweird.f32 %v1477
  %vm1485 = vmor %vm1483, %vm1484
  %v1486 = vsel %vm1485, %v1477, %v1482
  %v1487 = vrsqrt.pop %v1290
  %v1488 = vmul.f32 %v1487, %v1290
  %v1489 = vmul.f32 %v1488, %v1487
  %v1490 = vmul.f32 0.5, %v1489
  %v1491 = vsub.f32 1.5, %v1490
  %v1492 = vmul.f32 %v1487, %v1491
  %vm1493 = vweird.f32 %v1290
  %vm1494 = vweird.f32 %v1487
  %vm1495 = vmor %vm1493, %vm1494
  %v1496 = vsel %vm1495, %v1487, %v1492
  %v1497 = vrsqrt.pop %v1321
  %v1498 = vmul.f32 %v1497, %v1321
  %v1499 = vmul.f32 %v1498, %v1497
  %v1500 = vmul.f32 0.5, %v1499
  %v1501 = vsub.f32 1.5, %v1500
  %v1502 = vmul.f32 %v1497, %v1501
  %vm1503 = vweird.f32 %v1321
  %vm1504 = vweird.f32 %v1497
  %vm1505 = vmor %vm1503, %vm1504
  %v1506 = vsel %vm1505, %v1497, %v1502
  %v1507 = vrsqrt.pop %v1352
  %v1508 = vmul.f32 %v1507, %v1352
  %v1509 = vmul.f32 %v1508, %v1507
  %v1510 = vmul.f32 0.5, %v1509
  %v1511 = vsub.f32 1.5, %v1510
  %v1512 = vmul.f32 %v1507, %v1511
  %vm1513 = vweird.f32 %v1352
  %vm1514 = vweird.f32 %v1507
  %vm1515 = vmor %vm1513, %vm1514
  %v1516 = vsel %vm1515, %v1507, %v1512
  %v1517 = vrsqrt.pop %v1383
  %v1518 = vmul.f32 %v1517, %v1383
  %v1519 = vmul.f32 %v1518, %v1517
  %v1520 = vmul.f32 0.5, %v1519
  %v1521 = vsub.f32 1.5, %v1520
  %v1522 = vmul.f32 %v1517, %v1521
  %vm1523 = vweird.f32 %v1383
  %vm1524 = vweird.f32 %v1517
  %vm1525 = vmor %vm1523, %vm1524
  %v1526 = vsel %vm1525, %v1517, %v1522
  %v1527 = vrsqrt.pop %v1414
  %v1528 = vmul.f32 %v1527, %v1414
  %v1529 = vmul.f32 %v1528, %v1527
  %v1530 = vmul.f32 0.5, %v1529
  %v1531 = vsub.f32 1.5, %v1530
  %v1532 = vmul.f32 %v1527, %v1531
  %vm1533 = vweird.f32 %v1414
  %vm1534 = vweird.f32 %v1527
  %vm1535 = vmor %vm1533, %vm1534
  %v1536 = vsel %vm1535, %v1527, %v1532
  %v1537 = vrsqrt.pop %v1445
  %v1538 = vmul.f32 %v1537, %v1445
  %v1539 = vmul.f32 %v1538, %v1537
  %v1540 = vmul.f32 0.5, %v1539
  %v1541 = vsub.f32 1.5, %v1540
  %v1542 = vmul.f32 %v1537, %v1541
  %vm1543 = vweird.f32 %v1445
  %vm1544 = vweird.f32 %v1537
  %vm1545 = vmor %vm1543, %vm1544
  %v1546 = vsel %vm1545, %v1537, %v1542
  %v1547 = vrsqrt.pop %v1476
  %v1548 = vmul.f32 %v1547, %v1476
  %v1549 = vmul.f32 %v1548, %v1547
  %v1550 = vmul.f32 0.5, %v1549
  %v1551 = vsub.f32 1.5, %v1550
  %v1552 = vmul.f32 %v1547, %v1551
  %vm1553 = vweird.f32 %v1476
  %vm1554 = vweird.f32 %v1547
  %vm1555 = vmor %vm1553, %vm1554
  %v1556 = vsel %vm1555, %v1547, %v1552
  %v1557 = vmul.f32 %v972, %v1486
  %v1558 = vmul.f32 %v973, %v1486
  %v1559 = vmul.f32 %v974, %v1486
  %v1560 = vmul.f32 %v975, %v1486
  %v1561 = vmul.f32 %v976, %v1486
  %v1562 = vmul.f32 %v977, %v1486
  %v1563 = vmul.f32 %v978, %v1486
  %v1564 = vmul.f32 %v979, %v1486
  %v1565 = vmul.f32 %v980, %v1486
  %v1566 = vmul.f32 %v981, %v1486
  %v1567 = vmul.f32 %v982, %v1486
  %v1568 = vmul.f32 %v983, %v1486
  %v1569 = vmul.f32 %v984, %v1486
  %v1570 = vmul.f32 %v985, %v1486
  %v1571 = vmul.f32 %v986, %v1486
  %v1572 = vmul.f32 %v987, %v1486
  %v1573 = vmul.f32 %v988, %v1496
  %v1574 = vmul.f32 %v989, %v1496
  %v1575 = vmul.f32 %v990, %v1496
  %v1576 = vmul.f32 %v991, %v1496
  %v1577 = vmul.f32 %v992, %v1496
  %v1578 = vmul.f32 %v993, %v1496
  %v1579 = vmul.f32 %v994, %v1496
  %v1580 = vmul.f32 %v995, %v1496
  %v1581 = vmul.f32 %v996, %v1496
  %v1582 = vmul.f32 %v997, %v1496
  %v1583 = vmul.f32 %v998, %v1496
  %v1584 = vmul.f32 %v999, %v1496
  %v1585 = vmul.f32 %v1000, %v1496
  %v1586 = vmul.f32 %v1001, %v1496
  %v1587 = vmul.f32 %v1002, %v1496
  %v1588 = vmul.f32 %v1003, %v1496
  %v1589 = vmul.f32 %v1004, %v1506
  %v1590 = vmul.f32 %v1005, %v1506
  %v1591 = vmul.f32 %v1006, %v1506
  %v1592 = vmul.f32 %v1007, %v1506
  %v1593 = vmul.f32 %v1008, %v1506
  %v1594 = vmul.f32 %v1009, %v1506
  %v1595 = vmul.f32 %v1010, %v1506
  %v1596 = vmul.f32 %v1011, %v1506
  %v1597 = vmul.f32 %v1012, %v1506
  %v1598 = vmul.f32 %v1013, %v1506
  %v1599 = vmul.f32 %v1014, %v1506
  %v1600 = vmul.f32 %v1015, %v1506
  %v1601 = vmul.f32 %v1016, %v1506
  %v1602 = vmul.f32 %v1017, %v1506
  %v1603 = vmul.f32 %v1018, %v1506
  %v1604 = vmul.f32 %v1019, %v1506
  %v1605 = vmul.f32 %v1020, %v1516
  %v1606 = vmul.f32 %v1021, %v1516
  %v1607 = vmul.f32 %v1022, %v1516
  %v1608 = vmul.f32 %v1023, %v1516
  %v1609 = vmul.f32 %v1024, %v1516
  %v1610 = vmul.f32 %v1025, %v1516
  %v1611 = vmul.f32 %v1026, %v1516
  %v1612 = vmul.f32 %v1027, %v1516
  %v1613 = vmul.f32 %v1028, %v1516
  %v1614 = vmul.f32 %v1029, %v1516
  %v1615 = vmul.f32 %v1030, %v1516
  %v1616 = vmul.f32 %v1031, %v1516
  %v1617 = vmul.f32 %v1032, %v1516
  %v1618 = vmul.f32 %v1033, %v1516
  %v1619 = vmul.f32 %v1034, %v1516
  %v1620 = vmul.f32 %v1035, %v1516
  %v1621 = vmul.f32 %v1036, %v1526
  %v1622 = vmul.f32 %v1037, %v1526
  %v1623 = vmul.f32 %v1038, %v1526
  %v1624 = vmul.f32 %v1039, %v1526
  %v1625 = vmul.f32 %v1040, %v1526
  %v1626 = vmul.f32 %v1041, %v1526
  %v1627 = vmul.f32 %v1042, %v1526
  %v1628 = vmul.f32 %v1043, %v1526
  %v1629 = vmul.f32 %v1044, %v1526
  %v1630 = vmul.f32 %v1045, %v1526
  %v1631 = vmul.f32 %v1046, %v1526
  %v1632 = vmul.f32 %v1047, %v1526
  %v1633 = vmul.f32 %v1048, %v1526
  %v1634 = vmul.f32 %v1049, %v1526
  %v1635 = vmul.f32 %v1050, %v1526
  %v1636 = vmul.f32 %v1051, %v1526
  %v1637 = vmul.f32 %v1052, %v1536
  %v1638 = vmul.f32 %v1053, %v1536
  %v1639 = vmul.f32 %v1054, %v1536
  %v1640 = vmul.f32 %v1055, %v1536
  %v1641 = vmul.f32 %v1056, %v1536
  %v1642 = vmul.f32 %v1057, %v1536
  %v1643 = vmul.f32 %v1058, %v1536
  %v1644 = vmul.f32 %v1059, %v1536
  %v1645 = vmul.f32 %v1060, %v1536
  %v1646 = vmul.f32 %v1061, %v1536
  %v1647 = vmul.f32 %v1062, %v1536
  %v1648 = vmul.f32 %v1063, %v1536
  %v1649 = vmul.f32 %v1064, %v1536
  %v1650 = vmul.f32 %v1065, %v1536
  %v1651 = vmul.f32 %v1066, %v1536
  %v1652 = vmul.f32 %v1067, %v1536
  %v1653 = vmul.f32 %v1068, %v1546
  %v1654 = vmul.f32 %v1069, %v1546
  %v1655 = vmul.f32 %v1070, %v1546
  %v1656 = vmul.f32 %v1071, %v1546
  %v1657 = vmul.f32 %v1072, %v1546
  %v1658 = vmul.f32 %v1073, %v1546
  %v1659 = vmul.f32 %v1074, %v1546
  %v1660 = vmul.f32 %v1075, %v1546
  %v1661 = vmul.f32 %v1076, %v1546
  %v1662 = vmul.f32 %v1077, %v1546
  %v1663 = vmul.f32 %v1078, %v1546
  %v1664 = vmul.f32 %v1079, %v1546
  %v1665 = vmul.f32 %v1080, %v1546
  %v1666 = vmul.f32 %v1081, %v1546
  %v1667 = vmul.f32 %v1082, %v1546
  %v1668 = vmul.f32 %v1083, %v1546
  %v1669 = vmul.f32 %v1084, %v1556
  %v1670 = vmul.f32 %v1085, %v1556
  %v1671 = vmul.f32 %v1086, %v1556
  %v1672 = vmul.f32 %v1087, %v1556
  %v1673 = vmul.f32 %v1088, %v1556
  %v1674 = vmul.f32 %v1089, %v1556
  %v1675 = vmul.f32 %v1090, %v1556
  %v1676 = vmul.f32 %v1091, %v1556
  %v1677 = vmul.f32 %v1092, %v1556
  %v1678 = vmul.f32 %v1093, %v1556
  %v1679 = vmul.f32 %v1094, %v1556
  %v1680 = vmul.f32 %v1095, %v1556
  %v1681 = vmul.f32 %v1096, %v1556
  %v1682 = vmul.f32 %v1097, %v1556
  %v1683 = vmul.f32 %v1098, %v1556
  %v1684 = vmul.f32 %v1099, %v1556
  %1813 = vst [vmem:[#allocation1] ss:$2 sm:$0xff] %v1557
  %s1814 = scalar_lea.vmem [#allocation1], 1
  %1815 = vst [vmem:[%s1814] ss:$2 sm:$0xff] %v1558
  %s1816 = scalar_lea.vmem [#allocation1], 16
  %1817 = vst [vmem:[%s1816] ss:$2 sm:$0xff] %v1559
  %s1818 = scalar_lea.vmem [#allocation1], 17
  %1819 = vst [vmem:[%s1818] ss:$2 sm:$0xff] %v1560
  %s1820 = scalar_lea.vmem [#allocation1], 32
  %1821 = vst [vmem:[%s1820] ss:$2 sm:$0xff] %v1561
  %s1822 = scalar_lea.vmem [#allocation1], 33
  %1823 = vst [vmem:[%s1822] ss:$2 sm:$0xff] %v1562
  %s1824 = scalar_lea.vmem [#allocation1], 48
  %1825 = vst [vmem:[%s1824] ss:$2 sm:$0xff] %v1563
  %s1826 = scalar_lea.vmem [#allocation1], 49
  %1827 = vst [vmem:[%s1826] ss:$2 sm:$0xff] %v1564
  %v1828 = vld.sshfl [vmem:[#allocation1] sm:$0xff pattern:$0x75316420]
  %v1829 = vld.sshfl [vmem:[#allocation1 + $0x10] sm:$0xff pattern:$0x75316420]
  %v1830 = vld.sshfl [vmem:[#allocation1 + $0x20] sm:$0xff pattern:$0x75316420]
  %v1831 = vld.sshfl [vmem:[#allocation1 + $0x30] sm:$0xff pattern:$0x75316420]
  %1832 = vst [vmem:[#allocation1] ss:$2 sm:$0xff] %v1565
  %1833 = vst [vmem:[%s1814] ss:$2 sm:$0xff] %v1566
  %1834 = vst [vmem:[%s1816] ss:$2 sm:$0xff] %v1567
  %1835 = vst [vmem:[%s1818] ss:$2 sm:$0xff] %v1568
  %1836 = vst [vmem:[%s1820] ss:$2 sm:$0xff] %v1569
  %1837 = vst [vmem:[%s1822] ss:$2 sm:$0xff] %v1570
  %1838 = vst [vmem:[%s1824] ss:$2 sm:$0xff] %v1571
  %1839 = vst [vmem:[%s1826] ss:$2 sm:$0xff] %v1572
  %v1840 = vld.sshfl [vmem:[#allocation1] sm:$0xff pattern:$0x75316420]
  %v1841 = vld.sshfl [vmem:[#allocation1 + $0x10] sm:$0xff pattern:$0x75316420]
  %v1842 = vld.sshfl [vmem:[#allocation1 + $0x20] sm:$0xff pattern:$0x75316420]
  %v1843 = vld.sshfl [vmem:[#allocation1 + $0x30] sm:$0xff pattern:$0x75316420]
  %1844 = vst [vmem:[#allocation1] ss:$2 sm:$0xff] %v1573
  %1845 = vst [vmem:[%s1814] ss:$2 sm:$0xff] %v1574
  %1846 = vst [vmem:[%s1816] ss:$2 sm:$0xff] %v1575
  %1847 = vst [vmem:[%s1818] ss:$2 sm:$0xff] %v1576
  %1848 = vst [vmem:[%s1820] ss:$2 sm:$0xff] %v1577
  %1849 = vst [vmem:[%s1822] ss:$2 sm:$0xff] %v1578
  %1850 = vst [vmem:[%s1824] ss:$2 sm:$0xff] %v1579
  %1851 = vst [vmem:[%s1826] ss:$2 sm:$0xff] %v1580
  %v1852 = vld.sshfl [vmem:[#allocation1] sm:$0xff pattern:$0x75316420]
  %v1853 = vld.sshfl [vmem:[#allocation1 + $0x10] sm:$0xff pattern:$0x75316420]
  %v1854 = vld.sshfl [vmem:[#allocation1 + $0x20] sm:$0xff pattern:$0x75316420]
  %v1855 = vld.sshfl [vmem:[#allocation1 + $0x30] sm:$0xff pattern:$0x75316420]
  %1856 = vst [vmem:[#allocation1] ss:$2 sm:$0xff] %v1581
  %1857 = vst [vmem:[%s1814] ss:$2 sm:$0xff] %v1582
  %1858 = vst [vmem:[%s1816] ss:$2 sm:$0xff] %v1583
  %1859 = vst [vmem:[%s1818] ss:$2 sm:$0xff] %v1584
  %1860 = vst [vmem:[%s1820] ss:$2 sm:$0xff] %v1585
  %1861 = vst [vmem:[%s1822] ss:$2 sm:$0xff] %v1586
  %1862 = vst [vmem:[%s1824] ss:$2 sm:$0xff] %v1587
  %1863 = vst [vmem:[%s1826] ss:$2 sm:$0xff] %v1588
  %v1864 = vld.sshfl [vmem:[#allocation1] sm:$0xff pattern:$0x75316420]
  %v1865 = vld.sshfl [vmem:[#allocation1 + $0x10] sm:$0xff pattern:$0x75316420]
  %v1866 = vld.sshfl [vmem:[#allocation1 + $0x20] sm:$0xff pattern:$0x75316420]
  %v1867 = vld.sshfl [vmem:[#allocation1 + $0x30] sm:$0xff pattern:$0x75316420]
  %1868 = vst [vmem:[#allocation1] ss:$2 sm:$0xff] %v1589
  %1869 = vst [vmem:[%s1814] ss:$2 sm:$0xff] %v1590
  %1870 = vst [vmem:[%s1816] ss:$2 sm:$0xff] %v1591
  %1871 = vst [vmem:[%s1818] ss:$2 sm:$0xff] %v1592
  %1872 = vst [vmem:[%s1820] ss:$2 sm:$0xff] %v1593
  %1873 = vst [vmem:[%s1822] ss:$2 sm:$0xff] %v1594
  %1874 = vst [vmem:[%s1824] ss:$2 sm:$0xff] %v1595
  %1875 = vst [vmem:[%s1826] ss:$2 sm:$0xff] %v1596
  %v1876 = vld.sshfl [vmem:[#allocation1] sm:$0xff pattern:$0x75316420]
  %v1877 = vld.sshfl [vmem:[#allocation1 + $0x10] sm:$0xff pattern:$0x75316420]
  %v1878 = vld.sshfl [vmem:[#allocation1 + $0x20] sm:$0xff pattern:$0x75316420]
  %v1879 = vld.sshfl [vmem:[#allocation1 + $0x30] sm:$0xff pattern:$0x75316420]
  %1880 = vst [vmem:[#allocation1] ss:$2 sm:$0xff] %v1597
  %1881 = vst [vmem:[%s1814] ss:$2 sm:$0xff] %v1598
  %1882 = vst [vmem:[%s1816] ss:$2 sm:$0xff] %v1599
  %1883 = vst [vmem:[%s1818] ss:$2 sm:$0xff] %v1600
  %1884 = vst [vmem:[%s1820] ss:$2 sm:$0xff] %v1601
  %1885 = vst [vmem:[%s1822] ss:$2 sm:$0xff] %v1602
  %1886 = vst [vmem:[%s1824] ss:$2 sm:$0xff] %v1603
  %1887 = vst [vmem:[%s1826] ss:$2 sm:$0xff] %v1604
  %v1888 = vld.sshfl [vmem:[#allocation1] sm:$0xff pattern:$0x75316420]
  %v1889 = vld.sshfl [vmem:[#allocation1 + $0x10] sm:$0xff pattern:$0x75316420]
  %v1890 = vld.sshfl [vmem:[#allocation1 + $0x20] sm:$0xff pattern:$0x75316420]
  %v1891 = vld.sshfl [vmem:[#allocation1 + $0x30] sm:$0xff pattern:$0x75316420]
  %1892 = vst [vmem:[#allocation1] ss:$2 sm:$0xff] %v1605
  %1893 = vst [vmem:[%s1814] ss:$2 sm:$0xff] %v1606
  %1894 = vst [vmem:[%s1816] ss:$2 sm:$0xff] %v1607
  %1895 = vst [vmem:[%s1818] ss:$2 sm:$0xff] %v1608
  %1896 = vst [vmem:[%s1820] ss:$2 sm:$0xff] %v1609
  %1897 = vst [vmem:[%s1822] ss:$2 sm:$0xff] %v1610
  %1898 = vst [vmem:[%s1824] ss:$2 sm:$0xff] %v1611
  %1899 = vst [vmem:[%s1826] ss:$2 sm:$0xff] %v1612
  %v1900 = vld.sshfl [vmem:[#allocation1] sm:$0xff pattern:$0x75316420]
  %v1901 = vld.sshfl [vmem:[#allocation1 + $0x10] sm:$0xff pattern:$0x75316420]
  %v1902 = vld.sshfl [vmem:[#allocation1 + $0x20] sm:$0xff pattern:$0x75316420]
  %v1903 = vld.sshfl [vmem:[#allocation1 + $0x30] sm:$0xff pattern:$0x75316420]
  %1904 = vst [vmem:[#allocation1] ss:$2 sm:$0xff] %v1613
  %1905 = vst [vmem:[%s1814] ss:$2 sm:$0xff] %v1614
  %1906 = vst [vmem:[%s1816] ss:$2 sm:$0xff] %v1615
  %1907 = vst [vmem:[%s1818] ss:$2 sm:$0xff] %v1616
  %1908 = vst [vmem:[%s1820] ss:$2 sm:$0xff] %v1617
  %1909 = vst [vmem:[%s1822] ss:$2 sm:$0xff] %v1618
  %1910 = vst [vmem:[%s1824] ss:$2 sm:$0xff] %v1619
  %1911 = vst [vmem:[%s1826] ss:$2 sm:$0xff] %v1620
  %v1912 = vld.sshfl [vmem:[#allocation1] sm:$0xff pattern:$0x75316420]
  %v1913 = vld.sshfl [vmem:[#allocation1 + $0x10] sm:$0xff pattern:$0x75316420]
  %v1914 = vld.sshfl [vmem:[#allocation1 + $0x20] sm:$0xff pattern:$0x75316420]
  %v1915 = vld.sshfl [vmem:[#allocation1 + $0x30] sm:$0xff pattern:$0x75316420]
  %1916 = vst [vmem:[#allocation1] ss:$2 sm:$0xff] %v1621
  %1917 = vst [vmem:[%s1814] ss:$2 sm:$0xff] %v1622
  %1918 = vst [vmem:[%s1816] ss:$2 sm:$0xff] %v1623
  %1919 = vst [vmem:[%s1818] ss:$2 sm:$0xff] %v1624
  %1920 = vst [vmem:[%s1820] ss:$2 sm:$0xff] %v1625
  %1921 = vst [vmem:[%s1822] ss:$2 sm:$0xff] %v1626
  %1922 = vst [vmem:[%s1824] ss:$2 sm:$0xff] %v1627
  %1923 = vst [vmem:[%s1826] ss:$2 sm:$0xff] %v1628
  %v1924 = vld.sshfl [vmem:[#allocation1] sm:$0xff pattern:$0x75316420]
  %v1925 = vld.sshfl [vmem:[#allocation1 + $0x10] sm:$0xff pattern:$0x75316420]
  %v1926 = vld.sshfl [vmem:[#allocation1 + $0x20] sm:$0xff pattern:$0x75316420]
  %v1927 = vld.sshfl [vmem:[#allocation1 + $0x30] sm:$0xff pattern:$0x75316420]
  %1928 = vst [vmem:[#allocation1] ss:$2 sm:$0xff] %v1629
  %1929 = vst [vmem:[%s1814] ss:$2 sm:$0xff] %v1630
  %1930 = vst [vmem:[%s1816] ss:$2 sm:$0xff] %v1631
  %1931 = vst [vmem:[%s1818] ss:$2 sm:$0xff] %v1632
  %1932 = vst [vmem:[%s1820] ss:$2 sm:$0xff] %v1633
  %1933 = vst [vmem:[%s1822] ss:$2 sm:$0xff] %v1634
  %1934 = vst [vmem:[%s1824] ss:$2 sm:$0xff] %v1635
  %1935 = vst [vmem:[%s1826] ss:$2 sm:$0xff] %v1636
  %v1936 = vld.sshfl [vmem:[#allocation1] sm:$0xff pattern:$0x75316420]
  %v1937 = vld.sshfl [vmem:[#allocation1 + $0x10] sm:$0xff pattern:$0x75316420]
  %v1938 = vld.sshfl [vmem:[#allocation1 + $0x20] sm:$0xff pattern:$0x75316420]
  %v1939 = vld.sshfl [vmem:[#allocation1 + $0x30] sm:$0xff pattern:$0x75316420]
  %1940 = vst [vmem:[#allocation1] ss:$2 sm:$0xff] %v1637
  %1941 = vst [vmem:[%s1814] ss:$2 sm:$0xff] %v1638
  %1942 = vst [vmem:[%s1816] ss:$2 sm:$0xff] %v1639
  %1943 = vst [vmem:[%s1818] ss:$2 sm:$0xff] %v1640
  %1944 = vst [vmem:[%s1820] ss:$2 sm:$0xff] %v1641
  %1945 = vst [vmem:[%s1822] ss:$2 sm:$0xff] %v1642
  %1946 = vst [vmem:[%s1824] ss:$2 sm:$0xff] %v1643
  %1947 = vst [vmem:[%s1826] ss:$2 sm:$0xff] %v1644
  %v1948 = vld.sshfl [vmem:[#allocation1] sm:$0xff pattern:$0x75316420]
  %v1949 = vld.sshfl [vmem:[#allocation1 + $0x10] sm:$0xff pattern:$0x75316420]
  %v1950 = vld.sshfl [vmem:[#allocation1 + $0x20] sm:$0xff pattern:$0x75316420]
  %v1951 = vld.sshfl [vmem:[#allocation1 + $0x30] sm:$0xff pattern:$0x75316420]
  %1952 = vst [vmem:[#allocation1] ss:$2 sm:$0xff] %v1645
  %1953 = vst [vmem:[%s1814] ss:$2 sm:$0xff] %v1646
  %1954 = vst [vmem:[%s1816] ss:$2 sm:$0xff] %v1647
  %1955 = vst [vmem:[%s1818] ss:$2 sm:$0xff] %v1648
  %1956 = vst [vmem:[%s1820] ss:$2 sm:$0xff] %v1649
  %1957 = vst [vmem:[%s1822] ss:$2 sm:$0xff] %v1650
  %1958 = vst [vmem:[%s1824] ss:$2 sm:$0xff] %v1651
  %1959 = vst [vmem:[%s1826] ss:$2 sm:$0xff] %v1652
  %v1960 = vld.sshfl [vmem:[#allocation1] sm:$0xff pattern:$0x75316420]
  %v1961 = vld.sshfl [vmem:[#allocation1 + $0x10] sm:$0xff pattern:$0x75316420]
  %v1962 = vld.sshfl [vmem:[#allocation1 + $0x20] sm:$0xff pattern:$0x75316420]
  %v1963 = vld.sshfl [vmem:[#allocation1 + $0x30] sm:$0xff pattern:$0x75316420]
  %1964 = vst [vmem:[#allocation1] ss:$2 sm:$0xff] %v1653
  %1965 = vst [vmem:[%s1814] ss:$2 sm:$0xff] %v1654
  %1966 = vst [vmem:[%s1816] ss:$2 sm:$0xff] %v1655
  %1967 = vst [vmem:[%s1818] ss:$2 sm:$0xff] %v1656
  %1968 = vst [vmem:[%s1820] ss:$2 sm:$0xff] %v1657
  %1969 = vst [vmem:[%s1822] ss:$2 sm:$0xff] %v1658
  %1970 = vst [vmem:[%s1824] ss:$2 sm:$0xff] %v1659
  %1971 = vst [vmem:[%s1826] ss:$2 sm:$0xff] %v1660
  %v1972 = vld.sshfl [vmem:[#allocation1] sm:$0xff pattern:$0x75316420]
  %v1973 = vld.sshfl [vmem:[#allocation1 + $0x10] sm:$0xff pattern:$0x75316420]
  %v1974 = vld.sshfl [vmem:[#allocation1 + $0x20] sm:$0xff pattern:$0x75316420]
  %v1975 = vld.sshfl [vmem:[#allocation1 + $0x30] sm:$0xff pattern:$0x75316420]
  %1976 = vst [vmem:[#allocation1] ss:$2 sm:$0xff] %v1661
  %1977 = vst [vmem:[%s1814] ss:$2 sm:$0xff] %v1662
  %1978 = vst [vmem:[%s1816] ss:$2 sm:$0xff] %v1663
  %1979 = vst [vmem:[%s1818] ss:$2 sm:$0xff] %v1664
  %1980 = vst [vmem:[%s1820] ss:$2 sm:$0xff] %v1665
  %1981 = vst [vmem:[%s1822] ss:$2 sm:$0xff] %v1666
  %1982 = vst [vmem:[%s1824] ss:$2 sm:$0xff] %v1667
  %1983 = vst [vmem:[%s1826] ss:$2 sm:$0xff] %v1668
  %v1984 = vld.sshfl [vmem:[#allocation1] sm:$0xff pattern:$0x75316420]
  %v1985 = vld.sshfl [vmem:[#allocation1 + $0x10] sm:$0xff pattern:$0x75316420]
  %v1986 = vld.sshfl [vmem:[#allocation1 + $0x20] sm:$0xff pattern:$0x75316420]
  %v1987 = vld.sshfl [vmem:[#allocation1 + $0x30] sm:$0xff pattern:$0x75316420]
  %1988 = vst [vmem:[#allocation1] ss:$2 sm:$0xff] %v1669
  %1989 = vst [vmem:[%s1814] ss:$2 sm:$0xff] %v1670
  %1990 = vst [vmem:[%s1816] ss:$2 sm:$0xff] %v1671
  %1991 = vst [vmem:[%s1818] ss:$2 sm:$0xff] %v1672
  %1992 = vst [vmem:[%s1820] ss:$2 sm:$0xff] %v1673
  %1993 = vst [vmem:[%s1822] ss:$2 sm:$0xff] %v1674
  %1994 = vst [vmem:[%s1824] ss:$2 sm:$0xff] %v1675
  %1995 = vst [vmem:[%s1826] ss:$2 sm:$0xff] %v1676
  %v1996 = vld.sshfl [vmem:[#allocation1] sm:$0xff pattern:$0x75316420]
  %v1997 = vld.sshfl [vmem:[#allocation1 + $0x10] sm:$0xff pattern:$0x75316420]
  %v1998 = vld.sshfl [vmem:[#allocation1 + $0x20] sm:$0xff pattern:$0x75316420]
  %v1999 = vld.sshfl [vmem:[#allocation1 + $0x30] sm:$0xff pattern:$0x75316420]
  %2000 = vst [vmem:[#allocation1] ss:$2 sm:$0xff] %v1677
  %2001 = vst [vmem:[%s1814] ss:$2 sm:$0xff] %v1678
  %2002 = vst [vmem:[%s1816] ss:$2 sm:$0xff] %v1679
  %2003 = vst [vmem:[%s1818] ss:$2 sm:$0xff] %v1680
  %2004 = vst [vmem:[%s1820] ss:$2 sm:$0xff] %v1681
  %2005 = vst [vmem:[%s1822] ss:$2 sm:$0xff] %v1682
  %2006 = vst [vmem:[%s1824] ss:$2 sm:$0xff] %v1683
  %2007 = vst [vmem:[%s1826] ss:$2 sm:$0xff] %v1684
  %v2008 = vld.sshfl [vmem:[#allocation1] sm:$0xff pattern:$0x75316420]
  %v2009 = vld.sshfl [vmem:[#allocation1 + $0x10] sm:$0xff pattern:$0x75316420]
  %v2010 = vld.sshfl [vmem:[#allocation1 + $0x20] sm:$0xff pattern:$0x75316420]
  %v2011 = vld.sshfl [vmem:[#allocation1 + $0x30] sm:$0xff pattern:$0x75316420]
  %vm2076 = vcmask 195584
  %2077 = vst.msk [vmem:[%s5] sm:$0xff] %vm2076, %v1828
  %2078 = vst.msk [vmem:[%s5 + $0x8] sm:$0xff] %vm2076, %v1829
  %2079 = vst.msk [vmem:[%s5 + $0x10] sm:$0xff] %vm2076, %v1830
  %2080 = vst.msk [vmem:[%s5 + $0x18] sm:$0xff] %vm2076, %v1831
  %2081 = vst.msk [vmem:[%s5 + $0x20] sm:$0xff] %vm2076, %v1840
  %2082 = vst.msk [vmem:[%s5 + $0x28] sm:$0xff] %vm2076, %v1841
  %2083 = vst.msk [vmem:[%s5 + $0x30] sm:$0xff] %vm2076, %v1842
  %2084 = vst.msk [vmem:[%s5 + $0x38] sm:$0xff] %vm2076, %v1843
  %2085 = vst.msk [vmem:[%s5 + $0x40] sm:$0xff] %vm2076, %v1852
  %2086 = vst.msk [vmem:[%s5 + $0x48] sm:$0xff] %vm2076, %v1853
  %2087 = vst.msk [vmem:[%s5 + $0x50] sm:$0xff] %vm2076, %v1854
  %2088 = vst.msk [vmem:[%s5 + $0x58] sm:$0xff] %vm2076, %v1855
  %2089 = vst.msk [vmem:[%s5 + $0x60] sm:$0xff] %vm2076, %v1864
  %2090 = vst.msk [vmem:[%s5 + $0x68] sm:$0xff] %vm2076, %v1865
  %2091 = vst.msk [vmem:[%s5 + $0x70] sm:$0xff] %vm2076, %v1866
  %2092 = vst.msk [vmem:[%s5 + $0x78] sm:$0xff] %vm2076, %v1867
  %2093 = vst.msk [vmem:[%s5 + $0x80] sm:$0xff] %vm2076, %v1876
  %2094 = vst.msk [vmem:[%s5 + $0x88] sm:$0xff] %vm2076, %v1877
  %2095 = vst.msk [vmem:[%s5 + $0x90] sm:$0xff] %vm2076, %v1878
  %2096 = vst.msk [vmem:[%s5 + $0x98] sm:$0xff] %vm2076, %v1879
  %2097 = vst.msk [vmem:[%s5 + $0xa0] sm:$0xff] %vm2076, %v1888
  %2098 = vst.msk [vmem:[%s5 + $0xa8] sm:$0xff] %vm2076, %v1889
  %2099 = vst.msk [vmem:[%s5 + $0xb0] sm:$0xff] %vm2076, %v1890
  %2100 = vst.msk [vmem:[%s5 + $0xb8] sm:$0xff] %vm2076, %v1891
  %2101 = vst.msk [vmem:[%s5 + $0xc0] sm:$0xff] %vm2076, %v1900
  %2102 = vst.msk [vmem:[%s5 + $0xc8] sm:$0xff] %vm2076, %v1901
  %2103 = vst.msk [vmem:[%s5 + $0xd0] sm:$0xff] %vm2076, %v1902
  %2104 = vst.msk [vmem:[%s5 + $0xd8] sm:$0xff] %vm2076, %v1903
  %2105 = vst.msk [vmem:[%s5 + $0xe0] sm:$0xff] %vm2076, %v1912
  %2106 = vst.msk [vmem:[%s5 + $0xe8] sm:$0xff] %vm2076, %v1913
  %2107 = vst.msk [vmem:[%s5 + $0xf0] sm:$0xff] %vm2076, %v1914
  %2108 = vst.msk [vmem:[%s5 + $0xf8] sm:$0xff] %vm2076, %v1915
  %2109 = vst.msk [vmem:[%s5 + $0x100] sm:$0xff] %vm2076, %v1924
  %2110 = vst.msk [vmem:[%s5 + $0x108] sm:$0xff] %vm2076, %v1925
  %2111 = vst.msk [vmem:[%s5 + $0x110] sm:$0xff] %vm2076, %v1926
  %2112 = vst.msk [vmem:[%s5 + $0x118] sm:$0xff] %vm2076, %v1927
  %2113 = vst.msk [vmem:[%s5 + $0x120] sm:$0xff] %vm2076, %v1936
  %2114 = vst.msk [vmem:[%s5 + $0x128] sm:$0xff] %vm2076, %v1937
  %2115 = vst.msk [vmem:[%s5 + $0x130] sm:$0xff] %vm2076, %v1938
  %2116 = vst.msk [vmem:[%s5 + $0x138] sm:$0xff] %vm2076, %v1939
  %2117 = vst.msk [vmem:[%s5 + $0x140] sm:$0xff] %vm2076, %v1948
  %2118 = vst.msk [vmem:[%s5 + $0x148] sm:$0xff] %vm2076, %v1949
  %2119 = vst.msk [vmem:[%s5 + $0x150] sm:$0xff] %vm2076, %v1950
  %2120 = vst.msk [vmem:[%s5 + $0x158] sm:$0xff] %vm2076, %v1951
  %2121 = vst.msk [vmem:[%s5 + $0x160] sm:$0xff] %vm2076, %v1960
  %2122 = vst.msk [vmem:[%s5 + $0x168] sm:$0xff] %vm2076, %v1961
  %2123 = vst.msk [vmem:[%s5 + $0x170] sm:$0xff] %vm2076, %v1962
  %2124 = vst.msk [vmem:[%s5 + $0x178] sm:$0xff] %vm2076, %v1963
  %2125 = vst.msk [vmem:[%s5 + $0x180] sm:$0xff] %vm2076, %v1972
  %2126 = vst.msk [vmem:[%s5 + $0x188] sm:$0xff] %vm2076, %v1973
  %2127 = vst.msk [vmem:[%s5 + $0x190] sm:$0xff] %vm2076, %v1974
  %2128 = vst.msk [vmem:[%s5 + $0x198] sm:$0xff] %vm2076, %v1975
  %2129 = vst.msk [vmem:[%s5 + $0x1a0] sm:$0xff] %vm2076, %v1984
  %2130 = vst.msk [vmem:[%s5 + $0x1a8] sm:$0xff] %vm2076, %v1985
  %2131 = vst.msk [vmem:[%s5 + $0x1b0] sm:$0xff] %vm2076, %v1986
  %2132 = vst.msk [vmem:[%s5 + $0x1b8] sm:$0xff] %vm2076, %v1987
  %2133 = vst.msk [vmem:[%s5 + $0x1c0] sm:$0xff] %vm2076, %v1996
  %2134 = vst.msk [vmem:[%s5 + $0x1c8] sm:$0xff] %vm2076, %v1997
  %2135 = vst.msk [vmem:[%s5 + $0x1d0] sm:$0xff] %vm2076, %v1998
  %2136 = vst.msk [vmem:[%s5 + $0x1d8] sm:$0xff] %vm2076, %v1999
  %2137 = vst.msk [vmem:[%s5 + $0x1e0] sm:$0xff] %vm2076, %v2008
  %2138 = vst.msk [vmem:[%s5 + $0x1e8] sm:$0xff] %vm2076, %v2009
  %2139 = vst.msk [vmem:[%s5 + $0x1f0] sm:$0xff] %vm2076, %v2010
  %2140 = vst.msk [vmem:[%s5 + $0x1f8] sm:$0xff] %vm2076, %v2011
  // Predicated region
  $region22: #{tpu_custom_call.1} parent=0 // pred_check
    _
  $region23: #{tpu_custom_call.1} parent=0 // pred_check_branch
    %2142 = sbr.rel (0) target = $region25
  $region24: #{tpu_custom_call.1} parent=0 // pred_region
    _
  $region25: #{tpu_custom_call.1} parent=0 // pred_fallthru
    _
  // Predicated region
  $region26: #{tpu_custom_call.1} parent=0 // pred_check
    _
  $region27: #{tpu_custom_call.1} parent=0 // pred_check_branch
    %2144 = sbr.rel (0) target = $region29
  $region28: #{tpu_custom_call.1} parent=0 // pred_region
    _
  $region29: #{tpu_custom_call.1} parent=0 // pred_fallthru
    _

</llo_original>
